<compile_context>
chip_gen: v7x
topology: tpu7x:2x2x1
jax: 0.10.0
libtpu: 0.0.40
codegen_flags: <defaults>
</compile_context>

<pallas_src>
import functools

import jax
import jax.numpy as jnp
import numpy as np
from jax.experimental import pallas as pl
from jax.experimental.pallas import tpu as pltpu

# Module hyper-parameters (defaults of DifferentiableNMS.__init__)
ALPHA = 1.0
BETA = 1.0
GAMMA = 1.0
TEMPERATURE = 0.1
MAX_ITER = 10
EPS = 1e-10
CONF_THRESHOLD = 0.05
NORM_EPS = 1e-12             # F.normalize default eps
NEG_INV_TEMP = -1.0 / TEMPERATURE
INV_NORM_EPS = 1.0 / NORM_EPS

# Tiling / VMEM budgets (conservative across v5e / v6e / v7x).
VMEM_BLOCK_BUDGET = 16 * 1024 * 1024     # double-buffered input+output blocks
VMEM_LIMIT_BYTES = 32 * 1024 * 1024      # scoped VMEM limit (<= physical on all gens)
VREG_TILE_BUDGET = 8192                  # cap tb * P_pad (live-vreg pressure of unroll)


def _dnms_kernel(aux_ref, featsT_ref, comb_ref, cfeat_ref, cspat_ref,
                 out_agg_ref, out_assign_ref, *, num_valid, tb):
    """One grid step = `tb` batch elements. All (R, P_pad) work is lane-major in P."""
    P_pad = aux_ref.shape[-1]
    R = cfeat_ref.shape[1]
    C = comb_ref.shape[-1]

    # Pad-column mask: computed once per grid step (hoisted out of the batch unroll).
    if num_valid != P_pad:
        lane = jax.lax.broadcasted_iota(jnp.int32, (1, P_pad), 1)
        valid = (lane < num_valid).astype(jnp.float32)          # (1, P_pad)
    else:
        valid = None

    for b in range(tb):                      # static unroll over the batch tile
        aux = aux_ref[b]                     # (3, P_pad): rows = [scores, cx, cy]
        scores = aux[0:1, :]                 # (1, P_pad)
        cx = aux[1:2, :]
        cy = aux[2:3, :]
        feats_t = featsT_ref[b]              # (Fd, P_pad) f32
        comb = comb_ref[b]                   # (P_pad, C) bf16 = [boxes|feats|scores]
        cfeat = cfeat_ref[b]                 # (R, Fd) f32
        csp = cspat_ref[b]                   # (2, R) f32
        ccx = csp[0]                         # (R,)
        ccy = csp[1]

        # ---- feature cost: 1 - cosine similarity -> (R, P_pad), canonical matmul ------
        # rsqrt (EUP) with the F.normalize eps clamp folded in: min(rsqrt(ss), 1/eps).
        f_ss = jnp.sum(feats_t * feats_t, axis=0, keepdims=True)       # (1, P_pad)
        nf_t = feats_t * jnp.minimum(jax.lax.rsqrt(f_ss), INV_NORM_EPS)
        c_ss = jnp.sum(cfeat * cfeat, axis=1, keepdims=True)           # (R, 1)
        nc = cfeat * jnp.minimum(jax.lax.rsqrt(c_ss), INV_NORM_EPS)
        sim_feat = jnp.dot(nc, nf_t, preferred_element_type=jnp.float32)  # (R, P_pad)

        # ---- spatial cost: L2 distance centers<->centroids, / per-batch max -----------
        dx = ccx[:, None] - cx                                          # (R, P_pad)
        dy = ccy[:, None] - cy
        dist = jnp.sqrt(dx * dx + dy * dy)
        if valid is not None:
            dist = dist * valid                                         # pad cols -> 0
        max_dist = jnp.maximum(jnp.max(dist), EPS)                      # scalar
        spatial_cost = dist * (1.0 / max_dist)                          # one scalar recip

        # ---- full cost + Sinkhorn similarity ------------------------------------------
        conf_cost = ALPHA * (1.0 - scores)                              # (1, P_pad)
        cost = conf_cost + BETA * (1.0 - sim_feat) + GAMMA * spatial_cost
        sim = jnp.exp(cost * NEG_INV_TEMP)                              # (R, P_pad)
        if valid is not None:
            sim = sim * valid                                           # zero pad cols

        # ---- Sinkhorn normalization (statically unrolled) ------------------------------
        col_s = jnp.ones((R, 1), jnp.float32)                           # per-region
        row_s = jnp.ones((1, P_pad), jnp.float32)                       # per-proposal
        for it in range(MAX_ITER):
            exact = it == MAX_ITER - 1
            row_sum = jnp.sum(sim * col_s, axis=0, keepdims=True) + EPS   # sublane reduce
            row_s = (1.0 / row_sum) if exact else pl.reciprocal(row_sum, approx=True)
            col_sum = jnp.sum(sim * row_s, axis=1, keepdims=True) + EPS   # lane reduce
            col_s = (1.0 / col_sum) if exact else pl.reciprocal(col_sum, approx=True)
        assign = sim * row_s * col_s                                     # (R, P_pad)

        # ---- fused aggregation: bf16 MXU matmul over [boxes | features | scores] ------
        agg = jnp.dot(assign.astype(jnp.bfloat16), comb,
                      preferred_element_type=jnp.float32)               # (R, C)

        # ---- filter low-confidence regions ---------------------------------------------
        agg_scores = agg[:, C - 1:C]                                     # (R, 1)
        keep = agg_scores > CONF_THRESHOLD
        # NOTE: C < 128 -> masked partial store; negligible at R=8 (accepted consciously).
        out_agg_ref[b] = jnp.where(keep, agg, 0.0)
        out_assign_ref[b] = assign                                       # lane-dense store


def _roundup(x, m):
    return ((x + m - 1) // m) * m


def _per_batch_block_bytes(P_pad, Fd, R, C):
    """Approximate VMEM bytes per batch element for one (non-double-buffered) block."""
    b = 0
    b += 8 * P_pad * 4                                  # aux (3, P_pad) -> 8 sublanes
    b += _roundup(Fd, 8) * P_pad * 4                    # featsT (Fd, P_pad) f32
    b += P_pad * _roundup(C, 128) * 2                   # comb (P_pad, C) bf16
    b += _roundup(R, 8) * _roundup(Fd, 128) * 4         # cfeat
    b += 8 * _roundup(R, 128) * 4                       # cspat (2, R)
    b += _roundup(R, 8) * _roundup(C, 128) * 4          # out_agg
    b += _roundup(R, 8) * P_pad * 4                     # out_assign
    return b


def _num_tensorcores():
    try:
        dev = jax.devices()[0]
        nc = getattr(dev, "num_cores", None)
        if nc:
            return int(nc)
        kind = str(getattr(dev, "device_kind", "")).lower()
        if "v7" in kind or "7x" in kind:
            return 2
    except Exception:
        pass
    return 1


def _pick_batch_tile(B, per_batch_bytes, P_pad, num_cores):
    cap = min(8, B)
    cap = min(cap, max(1, VREG_TILE_BUDGET // max(P_pad, 1)))
    cap = min(cap, max(1, VMEM_BLOCK_BUDGET // max(1, 2 * per_batch_bytes)))
    divisors = [d for d in range(1, cap + 1) if B % d == 0]
    if num_cores >= 2:
        # Prefer an even grid length so both TensorCores get equal work.
        balanced = [d for d in divisors if (B // d) % 2 == 0]
        if balanced:
            return max(balanced)
    return max(divisors)   # single TC: largest tile, fewest grid steps


@functools.partial(jax.jit, static_argnames=("batch_tile",))
def differentiable_nms(scores, boxes, features, centroids_feat, centroids_spatial,
                       batch_tile=None):
    B, P = scores.shape
    Fd = features.shape[2]
    R = centroids_feat.shape[1]
    C = 4 + Fd + 1                                   # [boxes | features | scores]

    # Pad proposals up to a lane-width multiple; the kernel masks padded columns.
    P_pad = _roundup(P, 128)

    if batch_tile is None:
        tb = _pick_batch_tile(B, _per_batch_block_bytes(P_pad, Fd, R, C), P_pad,
                              _num_tensorcores())
    else:
        tb = batch_tile
    assert B % tb == 0, "batch_tile must divide batch size"

    # ---- wrapper-side layout plumbing (no kernel compute is hoisted here) -------------
    cx = (boxes[..., 0] + boxes[..., 2]) * 0.5
    cy = (boxes[..., 1] + boxes[..., 3]) * 0.5
    aux = jnp.stack([scores, cx, cy], axis=1)                              # (B, 3, P)
    feats_t = jnp.swapaxes(features, 1, 2)                                 # (B, Fd, P)
    comb = jnp.concatenate([boxes, features, scores[..., None]],
                           axis=-1).astype(jnp.bfloat16)                   # (B, P, C)
    cspat_t = jnp.swapaxes(centroids_spatial, 1, 2)                        # (B, 2, R)

    pad = P_pad - P
    if pad:
        aux = jnp.pad(aux, ((0, 0), (0, 0), (0, pad)))
        feats_t = jnp.pad(feats_t, ((0, 0), (0, 0), (0, pad)))
        comb = jnp.pad(comb, ((0, 0), (0, pad), (0, 0)))

    out_shapes = (
        jax.ShapeDtypeStruct((B, R, C), jnp.float32),        # filtered [boxes|feats|scores]
        jax.ShapeDtypeStruct((B, R, P_pad), jnp.float32),    # soft assignment (lane-dense)
    )
    in_specs = [
        pl.BlockSpec((tb, 3, P_pad), lambda b: (b, 0, 0)),
        pl.BlockSpec((tb, Fd, P_pad), lambda b: (b, 0, 0)),
        pl.BlockSpec((tb, P_pad, C), lambda b: (b, 0, 0)),
        pl.BlockSpec((tb, R, Fd), lambda b: (b, 0, 0)),
        pl.BlockSpec((tb, 2, R), lambda b: (b, 0, 0)),
    ]
    out_specs = (
        pl.BlockSpec((tb, R, C), lambda b: (b, 0, 0)),
        pl.BlockSpec((tb, R, P_pad), lambda b: (b, 0, 0)),
    )

    kernel = functools.partial(_dnms_kernel, num_valid=P, tb=tb)
    out_agg, out_assign_t = pl.pallas_call(
        kernel,
        out_shape=out_shapes,
        grid=(B // tb,),
        in_specs=in_specs,
        out_specs=out_specs,
        compiler_params=pltpu.CompilerParams(
            dimension_semantics=("parallel",),
            vmem_limit_bytes=VMEM_LIMIT_BYTES),
    )(aux, feats_t, comb, centroids_feat, cspat_t)

    # Slice the fused aggregation result back into the module's output contract.
    filtered_boxes = out_agg[:, :, 0:4]
    filtered_features = out_agg[:, :, 4:4 + Fd]
    filtered_scores = out_agg[:, :, 4 + Fd]
    soft_assignment = jnp.swapaxes(out_assign_t[:, :, :P], 1, 2)          # (B, P, R)
    return filtered_scores, filtered_boxes, filtered_features, soft_assignment


# ---------------- pure-JAX reference (mirrors the PyTorch forward) ----------
def _reference(scores, boxes, features, cfeat, cspat):
    B, P = scores.shape
    R = cfeat.shape[1]
    conf_cost = 1.0 - scores[:, :, None]                                   # [B,P,R]
    nf = features / jnp.maximum(
        jnp.linalg.norm(features, axis=2, keepdims=True), NORM_EPS)
    nc = cfeat / jnp.maximum(
        jnp.linalg.norm(cfeat, axis=2, keepdims=True), NORM_EPS)
    feat_cost = 1.0 - jnp.einsum("bpf,brf->bpr", nf, nc,
                                 precision=jax.lax.Precision.HIGHEST)
    centers = jnp.stack([(boxes[:, :, 0] + boxes[:, :, 2]) / 2,
                         (boxes[:, :, 1] + boxes[:, :, 3]) / 2], axis=2)   # [B,P,2]
    diff = centers[:, :, None, :] - cspat[:, None, :, :]
    dist = jnp.linalg.norm(diff, axis=3)                                   # [B,P,R]
    max_dist = jnp.maximum(jnp.max(dist.reshape(B, -1), axis=1), EPS)
    spatial_cost = dist / max_dist[:, None, None]
    cost = ALPHA * conf_cost + BETA * feat_cost + GAMMA * spatial_cost

    sim = jnp.exp(-cost / TEMPERATURE)
    row_s = jnp.ones((B, P, 1), jnp.float32)
    col_s = jnp.ones((B, 1, R), jnp.float32)
    for _ in range(MAX_ITER):
        row_s = 1.0 / (jnp.sum(sim * col_s, axis=2, keepdims=True) + EPS)
        col_s = 1.0 / (jnp.sum(sim * row_s, axis=1, keepdims=True) + EPS)
    assign = sim * row_s * col_s

    agg_scores = jnp.einsum("bp,bpr->br", scores, assign,
                            precision=jax.lax.Precision.HIGHEST)
    agg_boxes = jnp.einsum("bpr,bpd->brd", assign, boxes,
                           precision=jax.lax.Precision.HIGHEST)
    agg_feats = jnp.einsum("bpr,bpf->brf", assign, features,
                           precision=jax.lax.Precision.HIGHEST)

    keep = agg_scores > CONF_THRESHOLD
    return (agg_scores * keep.astype(jnp.float32),
            jnp.where(keep[:, :, None], agg_boxes, 0.0),
            jnp.where(keep[:, :, None], agg_feats, 0.0),
            assign)


if __name__ == "__main__":
    B, P, Fd, R = 2, 32, 32, 8
    key = jax.random.PRNGKey(0)
    k1, k2, k3, k4, k5 = jax.random.split(key, 5)

    scores = jax.random.uniform(k1, (B, P), dtype=jnp.float32)
    xy = jax.random.uniform(k2, (B, P, 2), dtype=jnp.float32) * 12.0
    wh = jax.random.uniform(k3, (B, P, 2), dtype=jnp.float32) * 4.0 + 0.5
    boxes = jnp.concatenate([xy, xy + wh], axis=2)                         # (x1,y1,x2,y2)
    features = jax.random.normal(k4, (B, P, Fd), dtype=jnp.float32)
    # deterministic synthetic centroids (module has no learned parameters)
    centroids_feat = jax.random.normal(k5, (B, R, Fd), dtype=jnp.float32)
    centroids_spatial = (
        jax.random.uniform(jax.random.PRNGKey(42), (B, R, 2), dtype=jnp.float32) * 16.0)

    outs = differentiable_nms(scores, boxes, features, centroids_feat, centroids_spatial)
    outs = jax.block_until_ready(outs)

    refs = _reference(scores, boxes, features, centroids_feat, centroids_spatial)
    for o, r in zip(outs, refs):
        np.testing.assert_allclose(np.asarray(o), np.asarray(r), rtol=2e-2, atol=2e-2)

    print("KERNEL_OK")
</pallas_src>

<mosaic_0001>
module attributes {stable_mosaic.version = 11 : i64} {
  func.func @_dnms_kernel(%arg0: i32, %arg1: memref<2x3x128xf32, #tpu.memory_space<vmem>>, %arg2: memref<2x32x128xf32, #tpu.memory_space<vmem>>, %arg3: memref<2x128x37xbf16, #tpu.memory_space<vmem>>, %arg4: memref<2x8x32xf32, #tpu.memory_space<vmem>>, %arg5: memref<2x2x8xf32, #tpu.memory_space<vmem>>, %arg6: memref<2x8x37xf32, #tpu.memory_space<vmem>>, %arg7: memref<2x8x128xf32, #tpu.memory_space<vmem>>) attributes {dimension_semantics = [#tpu.dimension_semantics<parallel>], iteration_bounds = array<i64: 1>, scalar_prefetch = 0 : i64, scratch_operands = 0 : i64, tpu.core_type = #tpu.core_type<tc>, window_params = [{transform_indices = @transform_0, window_bounds = array<i64: 2, 3, 128>}, {transform_indices = @transform_1, window_bounds = array<i64: 2, 32, 128>}, {transform_indices = @transform_2, window_bounds = array<i64: 2, 128, 37>}, {transform_indices = @transform_3, window_bounds = array<i64: 2, 8, 32>}, {transform_indices = @transform_4, window_bounds = array<i64: 2, 2, 8>}, {transform_indices = @transform_5, window_bounds = array<i64: 2, 8, 37>}, {transform_indices = @transform_6, window_bounds = array<i64: 2, 8, 128>}]} {
    %0 = tpu.iota {dimensions = array<i32: 1>} : vector<1x128xi32>
    %c32_i32 = arith.constant 32 : i32
    %1 = vector.broadcast %c32_i32 : i32 to vector<1x128xi32>
    %2 = arith.cmpi slt, %0, %1 : vector<1x128xi32>
    %3 = arith.extui %2 : vector<1x128xi1> to vector<1x128xi32>
    %4 = arith.sitofp %3 : vector<1x128xi32> to vector<1x128xf32>
    %c0 = arith.constant 0 : index
    %c0_0 = arith.constant 0 : index
    %c0_1 = arith.constant 0 : index
    %5 = vector.load %arg1[%c0, %c0_0, %c0_1] : memref<2x3x128xf32, #tpu.memory_space<vmem>>, vector<1x3x128xf32>
    %6 = vector.shape_cast %5 : vector<1x3x128xf32> to vector<3x128xf32>
    %7 = vector.extract_strided_slice %6 {offsets = [0, 0], sizes = [1, 128], strides = [1, 1]} : vector<3x128xf32> to vector<1x128xf32>
    %8 = vector.extract_strided_slice %6 {offsets = [1, 0], sizes = [1, 128], strides = [1, 1]} : vector<3x128xf32> to vector<1x128xf32>
    %9 = vector.extract_strided_slice %6 {offsets = [2, 0], sizes = [1, 128], strides = [1, 1]} : vector<3x128xf32> to vector<1x128xf32>
    %c0_2 = arith.constant 0 : index
    %c0_3 = arith.constant 0 : index
    %c0_4 = arith.constant 0 : index
    %10 = vector.load %arg2[%c0_2, %c0_3, %c0_4] : memref<2x32x128xf32, #tpu.memory_space<vmem>>, vector<1x32x128xf32>
    %11 = vector.shape_cast %10 : vector<1x32x128xf32> to vector<32x128xf32>
    %c0_5 = arith.constant 0 : index
    %c0_6 = arith.constant 0 : index
    %c0_7 = arith.constant 0 : index
    %12 = vector.load %arg3[%c0_5, %c0_6, %c0_7] : memref<2x128x37xbf16, #tpu.memory_space<vmem>>, vector<1x128x37xbf16>
    %13 = vector.shape_cast %12 : vector<1x128x37xbf16> to vector<128x37xbf16>
    %c0_8 = arith.constant 0 : index
    %c0_9 = arith.constant 0 : index
    %c0_10 = arith.constant 0 : index
    %14 = vector.load %arg4[%c0_8, %c0_9, %c0_10] : memref<2x8x32xf32, #tpu.memory_space<vmem>>, vector<1x8x32xf32>
    %15 = vector.shape_cast %14 : vector<1x8x32xf32> to vector<8x32xf32>
    %c0_11 = arith.constant 0 : index
    %c0_12 = arith.constant 0 : index
    %c0_13 = arith.constant 0 : index
    %16 = vector.load %arg5[%c0_11, %c0_12, %c0_13] : memref<2x2x8xf32, #tpu.memory_space<vmem>>, vector<1x2x8xf32>
    %17 = vector.shape_cast %16 : vector<1x2x8xf32> to vector<2x8xf32>
    %18 = vector.extract_strided_slice %17 {offsets = [0, 0], sizes = [1, 8], strides = [1, 1]} : vector<2x8xf32> to vector<1x8xf32>
    %19 = vector.shape_cast %18 : vector<1x8xf32> to vector<8xf32>
    %20 = vector.extract_strided_slice %17 {offsets = [1, 0], sizes = [1, 8], strides = [1, 1]} : vector<2x8xf32> to vector<1x8xf32>
    %21 = vector.shape_cast %20 : vector<1x8xf32> to vector<8xf32>
    %22 = arith.mulf %11, %11 : vector<32x128xf32>
    %cst = arith.constant dense<0.000000e+00> : vector<128xf32>
    %23 = vector.multi_reduction <add>, %22, %cst [0] : vector<32x128xf32> to vector<128xf32>
    %24 = vector.shape_cast %23 : vector<128xf32> to vector<1x128xf32>
    %25 = math.rsqrt %24 : vector<1x128xf32>
    %cst_14 = arith.constant 9.99999995E+11 : f32
    %26 = vector.broadcast %cst_14 : f32 to vector<1x128xf32>
    %27 = arith.minimumf %25, %26 : vector<1x128xf32>
    %28 = vector.broadcast %27 : vector<1x128xf32> to vector<32x128xf32>
    %29 = arith.mulf %11, %28 : vector<32x128xf32>
    %30 = arith.mulf %15, %15 : vector<8x32xf32>
    %cst_15 = arith.constant dense<0.000000e+00> : vector<8xf32>
    %31 = vector.multi_reduction <add>, %30, %cst_15 [1] : vector<8x32xf32> to vector<8xf32>
    %32 = vector.shape_cast %31 : vector<8xf32> to vector<8x1xf32>
    %33 = math.rsqrt %32 : vector<8x1xf32>
    %cst_16 = arith.constant 9.99999995E+11 : f32
    %34 = vector.broadcast %cst_16 : f32 to vector<8x1xf32>
    %35 = arith.minimumf %33, %34 : vector<8x1xf32>
    %36 = vector.broadcast %35 : vector<8x1xf32> to vector<8x32xf32>
    %37 = arith.mulf %15, %36 : vector<8x32xf32>
    %cst_17 = arith.constant dense<0.000000e+00> : vector<8x128xf32>
    %38 = tpu.matmul %37, %29, %cst_17 {dimension_numbers = #tpu.dot_dimension_numbers<[1], [0], [0], [1], [0, 0, 1, 1], [], []>} : vector<8x32xf32>, vector<32x128xf32>, vector<8x128xf32> -> vector<8x128xf32>
    %39 = vector.shape_cast %19 : vector<8xf32> to vector<8x1xf32>
    %40 = vector.broadcast %39 : vector<8x1xf32> to vector<8x128xf32>
    %41 = vector.broadcast %8 : vector<1x128xf32> to vector<8x128xf32>
    %42 = arith.subf %40, %41 : vector<8x128xf32>
    %43 = vector.shape_cast %21 : vector<8xf32> to vector<8x1xf32>
    %44 = vector.broadcast %43 : vector<8x1xf32> to vector<8x128xf32>
    %45 = vector.broadcast %9 : vector<1x128xf32> to vector<8x128xf32>
    %46 = arith.subf %44, %45 : vector<8x128xf32>
    %47 = arith.mulf %42, %42 : vector<8x128xf32>
    %48 = arith.mulf %46, %46 : vector<8x128xf32>
    %49 = arith.addf %47, %48 : vector<8x128xf32>
    %50 = math.sqrt %49 : vector<8x128xf32>
    %51 = vector.broadcast %4 : vector<1x128xf32> to vector<8x128xf32>
    %52 = arith.mulf %50, %51 : vector<8x128xf32>
    %53 = vector.shape_cast %52 : vector<8x128xf32> to vector<1x8x128xf32>
    %cst_18 = arith.constant dense<0xFF800000> : vector<1xf32>
    %54 = vector.multi_reduction <maximumf>, %53, %cst_18 [1, 2] : vector<1x8x128xf32> to vector<1xf32>
    %55 = vector.shape_cast %54 : vector<1xf32> to vector<1x1x1xf32>
    %56 = vector.extract %55[0, 0, 0] : f32 from vector<1x1x1xf32>
    %cst_19 = arith.constant 1.000000e-10 : f32
    %57 = arith.maximumf %56, %cst_19 : f32
    %cst_20 = arith.constant 1.000000e+00 : f32
    %58 = arith.divf %cst_20, %57 : f32
    %59 = vector.broadcast %58 : f32 to vector<8x128xf32>
    %60 = arith.mulf %52, %59 : vector<8x128xf32>
    %cst_21 = arith.constant 1.000000e+00 : f32
    %61 = vector.broadcast %cst_21 : f32 to vector<1x128xf32>
    %62 = arith.subf %61, %7 : vector<1x128xf32>
    %cst_22 = arith.constant 1.000000e+00 : f32
    %63 = vector.broadcast %cst_22 : f32 to vector<1x128xf32>
    %64 = arith.mulf %63, %62 : vector<1x128xf32>
    %cst_23 = arith.constant 1.000000e+00 : f32
    %65 = vector.broadcast %cst_23 : f32 to vector<8x128xf32>
    %66 = arith.subf %65, %38 : vector<8x128xf32>
    %cst_24 = arith.constant 1.000000e+00 : f32
    %67 = vector.broadcast %cst_24 : f32 to vector<8x128xf32>
    %68 = arith.mulf %67, %66 : vector<8x128xf32>
    %69 = vector.broadcast %64 : vector<1x128xf32> to vector<8x128xf32>
    %70 = arith.addf %69, %68 : vector<8x128xf32>
    %cst_25 = arith.constant 1.000000e+00 : f32
    %71 = vector.broadcast %cst_25 : f32 to vector<8x128xf32>
    %72 = arith.mulf %71, %60 : vector<8x128xf32>
    %73 = arith.addf %70, %72 : vector<8x128xf32>
    %cst_26 = arith.constant -1.000000e+01 : f32
    %74 = vector.broadcast %cst_26 : f32 to vector<8x128xf32>
    %75 = arith.mulf %73, %74 : vector<8x128xf32>
    %76 = math.exp %75 : vector<8x128xf32>
    %77 = vector.broadcast %4 : vector<1x128xf32> to vector<8x128xf32>
    %78 = arith.mulf %76, %77 : vector<8x128xf32>
    %cst_27 = arith.constant 1.000000e+00 : f32
    %79 = vector.broadcast %cst_27 : f32 to vector<8x1xf32>
    %80 = vector.broadcast %79 : vector<8x1xf32> to vector<8x128xf32>
    %81 = arith.mulf %78, %80 : vector<8x128xf32>
    %cst_28 = arith.constant dense<0.000000e+00> : vector<128xf32>
    %82 = vector.multi_reduction <add>, %81, %cst_28 [0] : vector<8x128xf32> to vector<128xf32>
    %83 = vector.shape_cast %82 : vector<128xf32> to vector<1x128xf32>
    %cst_29 = arith.constant 1.000000e-10 : f32
    %84 = vector.broadcast %cst_29 : f32 to vector<1x128xf32>
    %85 = arith.addf %83, %84 : vector<1x128xf32>
    %86 = tpu.reciprocal %85 {approx = true} : vector<1x128xf32> -> vector<1x128xf32>
    %87 = vector.broadcast %86 : vector<1x128xf32> to vector<8x128xf32>
    %88 = arith.mulf %78, %87 : vector<8x128xf32>
    %cst_30 = arith.constant dense<0.000000e+00> : vector<8xf32>
    %89 = vector.multi_reduction <add>, %88, %cst_30 [1] : vector<8x128xf32> to vector<8xf32>
    %90 = vector.shape_cast %89 : vector<8xf32> to vector<8x1xf32>
    %cst_31 = arith.constant 1.000000e-10 : f32
    %91 = vector.broadcast %cst_31 : f32 to vector<8x1xf32>
    %92 = arith.addf %90, %91 : vector<8x1xf32>
    %93 = tpu.reciprocal %92 {approx = true} : vector<8x1xf32> -> vector<8x1xf32>
    %94 = vector.broadcast %93 : vector<8x1xf32> to vector<8x128xf32>
    %95 = arith.mulf %78, %94 : vector<8x128xf32>
    %cst_32 = arith.constant dense<0.000000e+00> : vector<128xf32>
    %96 = vector.multi_reduction <add>, %95, %cst_32 [0] : vector<8x128xf32> to vector<128xf32>
    %97 = vector.shape_cast %96 : vector<128xf32> to vector<1x128xf32>
    %cst_33 = arith.constant 1.000000e-10 : f32
    %98 = vector.broadcast %cst_33 : f32 to vector<1x128xf32>
    %99 = arith.addf %97, %98 : vector<1x128xf32>
    %100 = tpu.reciprocal %99 {approx = true} : vector<1x128xf32> -> vector<1x128xf32>
    %101 = vector.broadcast %100 : vector<1x128xf32> to vector<8x128xf32>
    %102 = arith.mulf %78, %101 : vector<8x128xf32>
    %cst_34 = arith.constant dense<0.000000e+00> : vector<8xf32>
    %103 = vector.multi_reduction <add>, %102, %cst_34 [1] : vector<8x128xf32> to vector<8xf32>
    %104 = vector.shape_cast %103 : vector<8xf32> to vector<8x1xf32>
    %cst_35 = arith.constant 1.000000e-10 : f32
    %105 = vector.broadcast %cst_35 : f32 to vector<8x1xf32>
    %106 = arith.addf %104, %105 : vector<8x1xf32>
    %107 = tpu.reciprocal %106 {approx = true} : vector<8x1xf32> -> vector<8x1xf32>
    %108 = vector.broadcast %107 : vector<8x1xf32> to vector<8x128xf32>
    %109 = arith.mulf %78, %108 : vector<8x128xf32>
    %cst_36 = arith.constant dense<0.000000e+00> : vector<128xf32>
    %110 = vector.multi_reduction <add>, %109, %cst_36 [0] : vector<8x128xf32> to vector<128xf32>
    %111 = vector.shape_cast %110 : vector<128xf32> to vector<1x128xf32>
    %cst_37 = arith.constant 1.000000e-10 : f32
    %112 = vector.broadcast %cst_37 : f32 to vector<1x128xf32>
    %113 = arith.addf %111, %112 : vector<1x128xf32>
    %114 = tpu.reciprocal %113 {approx = true} : vector<1x128xf32> -> vector<1x128xf32>
    %115 = vector.broadcast %114 : vector<1x128xf32> to vector<8x128xf32>
    %116 = arith.mulf %78, %115 : vector<8x128xf32>
    %cst_38 = arith.constant dense<0.000000e+00> : vector<8xf32>
    %117 = vector.multi_reduction <add>, %116, %cst_38 [1] : vector<8x128xf32> to vector<8xf32>
    %118 = vector.shape_cast %117 : vector<8xf32> to vector<8x1xf32>
    %cst_39 = arith.constant 1.000000e-10 : f32
    %119 = vector.broadcast %cst_39 : f32 to vector<8x1xf32>
    %120 = arith.addf %118, %119 : vector<8x1xf32>
    %121 = tpu.reciprocal %120 {approx = true} : vector<8x1xf32> -> vector<8x1xf32>
    %122 = vector.broadcast %121 : vector<8x1xf32> to vector<8x128xf32>
    %123 = arith.mulf %78, %122 : vector<8x128xf32>
    %cst_40 = arith.constant dense<0.000000e+00> : vector<128xf32>
    %124 = vector.multi_reduction <add>, %123, %cst_40 [0] : vector<8x128xf32> to vector<128xf32>
    %125 = vector.shape_cast %124 : vector<128xf32> to vector<1x128xf32>
    %cst_41 = arith.constant 1.000000e-10 : f32
    %126 = vector.broadcast %cst_41 : f32 to vector<1x128xf32>
    %127 = arith.addf %125, %126 : vector<1x128xf32>
    %128 = tpu.reciprocal %127 {approx = true} : vector<1x128xf32> -> vector<1x128xf32>
    %129 = vector.broadcast %128 : vector<1x128xf32> to vector<8x128xf32>
    %130 = arith.mulf %78, %129 : vector<8x128xf32>
    %cst_42 = arith.constant dense<0.000000e+00> : vector<8xf32>
    %131 = vector.multi_reduction <add>, %130, %cst_42 [1] : vector<8x128xf32> to vector<8xf32>
    %132 = vector.shape_cast %131 : vector<8xf32> to vector<8x1xf32>
    %cst_43 = arith.constant 1.000000e-10 : f32
    %133 = vector.broadcast %cst_43 : f32 to vector<8x1xf32>
    %134 = arith.addf %132, %133 : vector<8x1xf32>
    %135 = tpu.reciprocal %134 {approx = true} : vector<8x1xf32> -> vector<8x1xf32>
    %136 = vector.broadcast %135 : vector<8x1xf32> to vector<8x128xf32>
    %137 = arith.mulf %78, %136 : vector<8x128xf32>
    %cst_44 = arith.constant dense<0.000000e+00> : vector<128xf32>
    %138 = vector.multi_reduction <add>, %137, %cst_44 [0] : vector<8x128xf32> to vector<128xf32>
    %139 = vector.shape_cast %138 : vector<128xf32> to vector<1x128xf32>
    %cst_45 = arith.constant 1.000000e-10 : f32
    %140 = vector.broadcast %cst_45 : f32 to vector<1x128xf32>
    %141 = arith.addf %139, %140 : vector<1x128xf32>
    %142 = tpu.reciprocal %141 {approx = true} : vector<1x128xf32> -> vector<1x128xf32>
    %143 = vector.broadcast %142 : vector<1x128xf32> to vector<8x128xf32>
    %144 = arith.mulf %78, %143 : vector<8x128xf32>
    %cst_46 = arith.constant dense<0.000000e+00> : vector<8xf32>
    %145 = vector.multi_reduction <add>, %144, %cst_46 [1] : vector<8x128xf32> to vector<8xf32>
    %146 = vector.shape_cast %145 : vector<8xf32> to vector<8x1xf32>
    %cst_47 = arith.constant 1.000000e-10 : f32
    %147 = vector.broadcast %cst_47 : f32 to vector<8x1xf32>
    %148 = arith.addf %146, %147 : vector<8x1xf32>
    %149 = tpu.reciprocal %148 {approx = true} : vector<8x1xf32> -> vector<8x1xf32>
    %150 = vector.broadcast %149 : vector<8x1xf32> to vector<8x128xf32>
    %151 = arith.mulf %78, %150 : vector<8x128xf32>
    %cst_48 = arith.constant dense<0.000000e+00> : vector<128xf32>
    %152 = vector.multi_reduction <add>, %151, %cst_48 [0] : vector<8x128xf32> to vector<128xf32>
    %153 = vector.shape_cast %152 : vector<128xf32> to vector<1x128xf32>
    %cst_49 = arith.constant 1.000000e-10 : f32
    %154 = vector.broadcast %cst_49 : f32 to vector<1x128xf32>
    %155 = arith.addf %153, %154 : vector<1x128xf32>
    %156 = tpu.reciprocal %155 {approx = true} : vector<1x128xf32> -> vector<1x128xf32>
    %157 = vector.broadcast %156 : vector<1x128xf32> to vector<8x128xf32>
    %158 = arith.mulf %78, %157 : vector<8x128xf32>
    %cst_50 = arith.constant dense<0.000000e+00> : vector<8xf32>
    %159 = vector.multi_reduction <add>, %158, %cst_50 [1] : vector<8x128xf32> to vector<8xf32>
    %160 = vector.shape_cast %159 : vector<8xf32> to vector<8x1xf32>
    %cst_51 = arith.constant 1.000000e-10 : f32
    %161 = vector.broadcast %cst_51 : f32 to vector<8x1xf32>
    %162 = arith.addf %160, %161 : vector<8x1xf32>
    %163 = tpu.reciprocal %162 {approx = true} : vector<8x1xf32> -> vector<8x1xf32>
    %164 = vector.broadcast %163 : vector<8x1xf32> to vector<8x128xf32>
    %165 = arith.mulf %78, %164 : vector<8x128xf32>
    %cst_52 = arith.constant dense<0.000000e+00> : vector<128xf32>
    %166 = vector.multi_reduction <add>, %165, %cst_52 [0] : vector<8x128xf32> to vector<128xf32>
    %167 = vector.shape_cast %166 : vector<128xf32> to vector<1x128xf32>
    %cst_53 = arith.constant 1.000000e-10 : f32
    %168 = vector.broadcast %cst_53 : f32 to vector<1x128xf32>
    %169 = arith.addf %167, %168 : vector<1x128xf32>
    %170 = tpu.reciprocal %169 {approx = true} : vector<1x128xf32> -> vector<1x128xf32>
    %171 = vector.broadcast %170 : vector<1x128xf32> to vector<8x128xf32>
    %172 = arith.mulf %78, %171 : vector<8x128xf32>
    %cst_54 = arith.constant dense<0.000000e+00> : vector<8xf32>
    %173 = vector.multi_reduction <add>, %172, %cst_54 [1] : vector<8x128xf32> to vector<8xf32>
    %174 = vector.shape_cast %173 : vector<8xf32> to vector<8x1xf32>
    %cst_55 = arith.constant 1.000000e-10 : f32
    %175 = vector.broadcast %cst_55 : f32 to vector<8x1xf32>
    %176 = arith.addf %174, %175 : vector<8x1xf32>
    %177 = tpu.reciprocal %176 {approx = true} : vector<8x1xf32> -> vector<8x1xf32>
    %178 = vector.broadcast %177 : vector<8x1xf32> to vector<8x128xf32>
    %179 = arith.mulf %78, %178 : vector<8x128xf32>
    %cst_56 = arith.constant dense<0.000000e+00> : vector<128xf32>
    %180 = vector.multi_reduction <add>, %179, %cst_56 [0] : vector<8x128xf32> to vector<128xf32>
    %181 = vector.shape_cast %180 : vector<128xf32> to vector<1x128xf32>
    %cst_57 = arith.constant 1.000000e-10 : f32
    %182 = vector.broadcast %cst_57 : f32 to vector<1x128xf32>
    %183 = arith.addf %181, %182 : vector<1x128xf32>
    %184 = tpu.reciprocal %183 {approx = true} : vector<1x128xf32> -> vector<1x128xf32>
    %185 = vector.broadcast %184 : vector<1x128xf32> to vector<8x128xf32>
    %186 = arith.mulf %78, %185 : vector<8x128xf32>
    %cst_58 = arith.constant dense<0.000000e+00> : vector<8xf32>
    %187 = vector.multi_reduction <add>, %186, %cst_58 [1] : vector<8x128xf32> to vector<8xf32>
    %188 = vector.shape_cast %187 : vector<8xf32> to vector<8x1xf32>
    %cst_59 = arith.constant 1.000000e-10 : f32
    %189 = vector.broadcast %cst_59 : f32 to vector<8x1xf32>
    %190 = arith.addf %188, %189 : vector<8x1xf32>
    %191 = tpu.reciprocal %190 {approx = true} : vector<8x1xf32> -> vector<8x1xf32>
    %192 = vector.broadcast %191 : vector<8x1xf32> to vector<8x128xf32>
    %193 = arith.mulf %78, %192 : vector<8x128xf32>
    %cst_60 = arith.constant dense<0.000000e+00> : vector<128xf32>
    %194 = vector.multi_reduction <add>, %193, %cst_60 [0] : vector<8x128xf32> to vector<128xf32>
    %195 = vector.shape_cast %194 : vector<128xf32> to vector<1x128xf32>
    %cst_61 = arith.constant 1.000000e-10 : f32
    %196 = vector.broadcast %cst_61 : f32 to vector<1x128xf32>
    %197 = arith.addf %195, %196 : vector<1x128xf32>
    %198 = tpu.reciprocal %197 {approx = true} : vector<1x128xf32> -> vector<1x128xf32>
    %199 = vector.broadcast %198 : vector<1x128xf32> to vector<8x128xf32>
    %200 = arith.mulf %78, %199 : vector<8x128xf32>
    %cst_62 = arith.constant dense<0.000000e+00> : vector<8xf32>
    %201 = vector.multi_reduction <add>, %200, %cst_62 [1] : vector<8x128xf32> to vector<8xf32>
    %202 = vector.shape_cast %201 : vector<8xf32> to vector<8x1xf32>
    %cst_63 = arith.constant 1.000000e-10 : f32
    %203 = vector.broadcast %cst_63 : f32 to vector<8x1xf32>
    %204 = arith.addf %202, %203 : vector<8x1xf32>
    %205 = tpu.reciprocal %204 {approx = true} : vector<8x1xf32> -> vector<8x1xf32>
    %206 = vector.broadcast %205 : vector<8x1xf32> to vector<8x128xf32>
    %207 = arith.mulf %78, %206 : vector<8x128xf32>
    %cst_64 = arith.constant dense<0.000000e+00> : vector<128xf32>
    %208 = vector.multi_reduction <add>, %207, %cst_64 [0] : vector<8x128xf32> to vector<128xf32>
    %209 = vector.shape_cast %208 : vector<128xf32> to vector<1x128xf32>
    %cst_65 = arith.constant 1.000000e-10 : f32
    %210 = vector.broadcast %cst_65 : f32 to vector<1x128xf32>
    %211 = arith.addf %209, %210 : vector<1x128xf32>
    %cst_66 = arith.constant 1.000000e+00 : f32
    %212 = vector.broadcast %cst_66 : f32 to vector<1x128xf32>
    %213 = arith.divf %212, %211 : vector<1x128xf32>
    %214 = vector.broadcast %213 : vector<1x128xf32> to vector<8x128xf32>
    %215 = arith.mulf %78, %214 : vector<8x128xf32>
    %cst_67 = arith.constant dense<0.000000e+00> : vector<8xf32>
    %216 = vector.multi_reduction <add>, %215, %cst_67 [1] : vector<8x128xf32> to vector<8xf32>
    %217 = vector.shape_cast %216 : vector<8xf32> to vector<8x1xf32>
    %cst_68 = arith.constant 1.000000e-10 : f32
    %218 = vector.broadcast %cst_68 : f32 to vector<8x1xf32>
    %219 = arith.addf %217, %218 : vector<8x1xf32>
    %cst_69 = arith.constant 1.000000e+00 : f32
    %220 = vector.broadcast %cst_69 : f32 to vector<8x1xf32>
    %221 = arith.divf %220, %219 : vector<8x1xf32>
    %222 = vector.broadcast %213 : vector<1x128xf32> to vector<8x128xf32>
    %223 = arith.mulf %78, %222 : vector<8x128xf32>
    %224 = vector.broadcast %221 : vector<8x1xf32> to vector<8x128xf32>
    %225 = arith.mulf %223, %224 : vector<8x128xf32>
    %226 = arith.truncf %225 : vector<8x128xf32> to vector<8x128xbf16>
    %cst_70 = arith.constant dense<0.000000e+00> : vector<8x37xf32>
    %227 = tpu.matmul %226, %13, %cst_70 {dimension_numbers = #tpu.dot_dimension_numbers<[1], [0], [0], [1], [0, 0, 1, 1], [], []>} : vector<8x128xbf16>, vector<128x37xbf16>, vector<8x37xf32> -> vector<8x37xf32>
    %228 = vector.extract_strided_slice %227 {offsets = [0, 36], sizes = [8, 1], strides = [1, 1]} : vector<8x37xf32> to vector<8x1xf32>
    %cst_71 = arith.constant 5.000000e-02 : f32
    %229 = vector.broadcast %cst_71 : f32 to vector<8x1xf32>
    %230 = arith.cmpf ogt, %228, %229 : vector<8x1xf32>
    %cst_72 = arith.constant 0.000000e+00 : f32
    %231 = vector.shape_cast %230 : vector<8x1xi1> to vector<8x1xi1>
    %232 = vector.broadcast %231 : vector<8x1xi1> to vector<8x37xi1>
    %233 = vector.broadcast %cst_72 : f32 to vector<8x37xf32>
    %234 = arith.select %232, %227, %233 : vector<8x37xi1>, vector<8x37xf32>
    %c0_73 = arith.constant 0 : index
    %c0_74 = arith.constant 0 : index
    %c0_75 = arith.constant 0 : index
    %235 = vector.load %arg6[%c0_73, %c0_74, %c0_75] : memref<2x8x37xf32, #tpu.memory_space<vmem>>, vector<1x8x37xf32>
    %236 = vector.shape_cast %235 : vector<1x8x37xf32> to vector<8x37xf32>
    %237 = vector.shape_cast %234 : vector<8x37xf32> to vector<1x8x37xf32>
    tpu.vector_store %arg6[%c0_73, %c0_74, %c0_75], %237 {strides = array<i32>} : memref<2x8x37xf32, #tpu.memory_space<vmem>>, vector<1x8x37xf32>,
    %c0_76 = arith.constant 0 : index
    %c0_77 = arith.constant 0 : index
    %c0_78 = arith.constant 0 : index
    %238 = vector.load %arg7[%c0_76, %c0_77, %c0_78] : memref<2x8x128xf32, #tpu.memory_space<vmem>>, vector<1x8x128xf32>
    %239 = vector.shape_cast %238 : vector<1x8x128xf32> to vector<8x128xf32>
    %240 = vector.shape_cast %225 : vector<8x128xf32> to vector<1x8x128xf32>
    tpu.vector_store %arg7[%c0_76, %c0_77, %c0_78], %240 {strides = array<i32>} : memref<2x8x128xf32, #tpu.memory_space<vmem>>, vector<1x8x128xf32>,
    %c1 = arith.constant 1 : index
    %c0_79 = arith.constant 0 : index
    %c0_80 = arith.constant 0 : index
    %241 = vector.load %arg1[%c1, %c0_79, %c0_80] : memref<2x3x128xf32, #tpu.memory_space<vmem>>, vector<1x3x128xf32>
    %242 = vector.shape_cast %241 : vector<1x3x128xf32> to vector<3x128xf32>
    %243 = vector.extract_strided_slice %242 {offsets = [0, 0], sizes = [1, 128], strides = [1, 1]} : vector<3x128xf32> to vector<1x128xf32>
    %244 = vector.extract_strided_slice %242 {offsets = [1, 0], sizes = [1, 128], strides = [1, 1]} : vector<3x128xf32> to vector<1x128xf32>
    %245 = vector.extract_strided_slice %242 {offsets = [2, 0], sizes = [1, 128], strides = [1, 1]} : vector<3x128xf32> to vector<1x128xf32>
    %c1_81 = arith.constant 1 : index
    %c0_82 = arith.constant 0 : index
    %c0_83 = arith.constant 0 : index
    %246 = vector.load %arg2[%c1_81, %c0_82, %c0_83] : memref<2x32x128xf32, #tpu.memory_space<vmem>>, vector<1x32x128xf32>
    %247 = vector.shape_cast %246 : vector<1x32x128xf32> to vector<32x128xf32>
    %c1_84 = arith.constant 1 : index
    %c0_85 = arith.constant 0 : index
    %c0_86 = arith.constant 0 : index
    %248 = vector.load %arg3[%c1_84, %c0_85, %c0_86] : memref<2x128x37xbf16, #tpu.memory_space<vmem>>, vector<1x128x37xbf16>
    %249 = vector.shape_cast %248 : vector<1x128x37xbf16> to vector<128x37xbf16>
    %c1_87 = arith.constant 1 : index
    %c0_88 = arith.constant 0 : index
    %c0_89 = arith.constant 0 : index
    %250 = vector.load %arg4[%c1_87, %c0_88, %c0_89] : memref<2x8x32xf32, #tpu.memory_space<vmem>>, vector<1x8x32xf32>
    %251 = vector.shape_cast %250 : vector<1x8x32xf32> to vector<8x32xf32>
    %c1_90 = arith.constant 1 : index
    %c0_91 = arith.constant 0 : index
    %c0_92 = arith.constant 0 : index
    %252 = vector.load %arg5[%c1_90, %c0_91, %c0_92] : memref<2x2x8xf32, #tpu.memory_space<vmem>>, vector<1x2x8xf32>
    %253 = vector.shape_cast %252 : vector<1x2x8xf32> to vector<2x8xf32>
    %254 = vector.extract_strided_slice %253 {offsets = [0, 0], sizes = [1, 8], strides = [1, 1]} : vector<2x8xf32> to vector<1x8xf32>
    %255 = vector.shape_cast %254 : vector<1x8xf32> to vector<8xf32>
    %256 = vector.extract_strided_slice %253 {offsets = [1, 0], sizes = [1, 8], strides = [1, 1]} : vector<2x8xf32> to vector<1x8xf32>
    %257 = vector.shape_cast %256 : vector<1x8xf32> to vector<8xf32>
    %258 = arith.mulf %247, %247 : vector<32x128xf32>
    %cst_93 = arith.constant dense<0.000000e+00> : vector<128xf32>
    %259 = vector.multi_reduction <add>, %258, %cst_93 [0] : vector<32x128xf32> to vector<128xf32>
    %260 = vector.shape_cast %259 : vector<128xf32> to vector<1x128xf32>
    %261 = math.rsqrt %260 : vector<1x128xf32>
    %cst_94 = arith.constant 9.99999995E+11 : f32
    %262 = vector.broadcast %cst_94 : f32 to vector<1x128xf32>
    %263 = arith.minimumf %261, %262 : vector<1x128xf32>
    %264 = vector.broadcast %263 : vector<1x128xf32> to vector<32x128xf32>
    %265 = arith.mulf %247, %264 : vector<32x128xf32>
    %266 = arith.mulf %251, %251 : vector<8x32xf32>
    %cst_95 = arith.constant dense<0.000000e+00> : vector<8xf32>
    %267 = vector.multi_reduction <add>, %266, %cst_95 [1] : vector<8x32xf32> to vector<8xf32>
    %268 = vector.shape_cast %267 : vector<8xf32> to vector<8x1xf32>
    %269 = math.rsqrt %268 : vector<8x1xf32>
    %cst_96 = arith.constant 9.99999995E+11 : f32
    %270 = vector.broadcast %cst_96 : f32 to vector<8x1xf32>
    %271 = arith.minimumf %269, %270 : vector<8x1xf32>
    %272 = vector.broadcast %271 : vector<8x1xf32> to vector<8x32xf32>
    %273 = arith.mulf %251, %272 : vector<8x32xf32>
    %cst_97 = arith.constant dense<0.000000e+00> : vector<8x128xf32>
    %274 = tpu.matmul %273, %265, %cst_97 {dimension_numbers = #tpu.dot_dimension_numbers<[1], [0], [0], [1], [0, 0, 1, 1], [], []>} : vector<8x32xf32>, vector<32x128xf32>, vector<8x128xf32> -> vector<8x128xf32>
    %275 = vector.shape_cast %255 : vector<8xf32> to vector<8x1xf32>
    %276 = vector.broadcast %275 : vector<8x1xf32> to vector<8x128xf32>
    %277 = vector.broadcast %244 : vector<1x128xf32> to vector<8x128xf32>
    %278 = arith.subf %276, %277 : vector<8x128xf32>
    %279 = vector.shape_cast %257 : vector<8xf32> to vector<8x1xf32>
    %280 = vector.broadcast %279 : vector<8x1xf32> to vector<8x128xf32>
    %281 = vector.broadcast %245 : vector<1x128xf32> to vector<8x128xf32>
    %282 = arith.subf %280, %281 : vector<8x128xf32>
    %283 = arith.mulf %278, %278 : vector<8x128xf32>
    %284 = arith.mulf %282, %282 : vector<8x128xf32>
    %285 = arith.addf %283, %284 : vector<8x128xf32>
    %286 = math.sqrt %285 : vector<8x128xf32>
    %287 = vector.broadcast %4 : vector<1x128xf32> to vector<8x128xf32>
    %288 = arith.mulf %286, %287 : vector<8x128xf32>
    %289 = vector.shape_cast %288 : vector<8x128xf32> to vector<1x8x128xf32>
    %cst_98 = arith.constant dense<0xFF800000> : vector<1xf32>
    %290 = vector.multi_reduction <maximumf>, %289, %cst_98 [1, 2] : vector<1x8x128xf32> to vector<1xf32>
    %291 = vector.shape_cast %290 : vector<1xf32> to vector<1x1x1xf32>
    %292 = vector.extract %291[0, 0, 0] : f32 from vector<1x1x1xf32>
    %cst_99 = arith.constant 1.000000e-10 : f32
    %293 = arith.maximumf %292, %cst_99 : f32
    %cst_100 = arith.constant 1.000000e+00 : f32
    %294 = arith.divf %cst_100, %293 : f32
    %295 = vector.broadcast %294 : f32 to vector<8x128xf32>
    %296 = arith.mulf %288, %295 : vector<8x128xf32>
    %cst_101 = arith.constant 1.000000e+00 : f32
    %297 = vector.broadcast %cst_101 : f32 to vector<1x128xf32>
    %298 = arith.subf %297, %243 : vector<1x128xf32>
    %cst_102 = arith.constant 1.000000e+00 : f32
    %299 = vector.broadcast %cst_102 : f32 to vector<1x128xf32>
    %300 = arith.mulf %299, %298 : vector<1x128xf32>
    %cst_103 = arith.constant 1.000000e+00 : f32
    %301 = vector.broadcast %cst_103 : f32 to vector<8x128xf32>
    %302 = arith.subf %301, %274 : vector<8x128xf32>
    %cst_104 = arith.constant 1.000000e+00 : f32
    %303 = vector.broadcast %cst_104 : f32 to vector<8x128xf32>
    %304 = arith.mulf %303, %302 : vector<8x128xf32>
    %305 = vector.broadcast %300 : vector<1x128xf32> to vector<8x128xf32>
    %306 = arith.addf %305, %304 : vector<8x128xf32>
    %cst_105 = arith.constant 1.000000e+00 : f32
    %307 = vector.broadcast %cst_105 : f32 to vector<8x128xf32>
    %308 = arith.mulf %307, %296 : vector<8x128xf32>
    %309 = arith.addf %306, %308 : vector<8x128xf32>
    %cst_106 = arith.constant -1.000000e+01 : f32
    %310 = vector.broadcast %cst_106 : f32 to vector<8x128xf32>
    %311 = arith.mulf %309, %310 : vector<8x128xf32>
    %312 = math.exp %311 : vector<8x128xf32>
    %313 = vector.broadcast %4 : vector<1x128xf32> to vector<8x128xf32>
    %314 = arith.mulf %312, %313 : vector<8x128xf32>
    %cst_107 = arith.constant 1.000000e+00 : f32
    %315 = vector.broadcast %cst_107 : f32 to vector<8x1xf32>
    %316 = vector.broadcast %315 : vector<8x1xf32> to vector<8x128xf32>
    %317 = arith.mulf %314, %316 : vector<8x128xf32>
    %cst_108 = arith.constant dense<0.000000e+00> : vector<128xf32>
    %318 = vector.multi_reduction <add>, %317, %cst_108 [0] : vector<8x128xf32> to vector<128xf32>
    %319 = vector.shape_cast %318 : vector<128xf32> to vector<1x128xf32>
    %cst_109 = arith.constant 1.000000e-10 : f32
    %320 = vector.broadcast %cst_109 : f32 to vector<1x128xf32>
    %321 = arith.addf %319, %320 : vector<1x128xf32>
    %322 = tpu.reciprocal %321 {approx = true} : vector<1x128xf32> -> vector<1x128xf32>
    %323 = vector.broadcast %322 : vector<1x128xf32> to vector<8x128xf32>
    %324 = arith.mulf %314, %323 : vector<8x128xf32>
    %cst_110 = arith.constant dense<0.000000e+00> : vector<8xf32>
    %325 = vector.multi_reduction <add>, %324, %cst_110 [1] : vector<8x128xf32> to vector<8xf32>
    %326 = vector.shape_cast %325 : vector<8xf32> to vector<8x1xf32>
    %cst_111 = arith.constant 1.000000e-10 : f32
    %327 = vector.broadcast %cst_111 : f32 to vector<8x1xf32>
    %328 = arith.addf %326, %327 : vector<8x1xf32>
    %329 = tpu.reciprocal %328 {approx = true} : vector<8x1xf32> -> vector<8x1xf32>
    %330 = vector.broadcast %329 : vector<8x1xf32> to vector<8x128xf32>
    %331 = arith.mulf %314, %330 : vector<8x128xf32>
    %cst_112 = arith.constant dense<0.000000e+00> : vector<128xf32>
    %332 = vector.multi_reduction <add>, %331, %cst_112 [0] : vector<8x128xf32> to vector<128xf32>
    %333 = vector.shape_cast %332 : vector<128xf32> to vector<1x128xf32>
    %cst_113 = arith.constant 1.000000e-10 : f32
    %334 = vector.broadcast %cst_113 : f32 to vector<1x128xf32>
    %335 = arith.addf %333, %334 : vector<1x128xf32>
    %336 = tpu.reciprocal %335 {approx = true} : vector<1x128xf32> -> vector<1x128xf32>
    %337 = vector.broadcast %336 : vector<1x128xf32> to vector<8x128xf32>
    %338 = arith.mulf %314, %337 : vector<8x128xf32>
    %cst_114 = arith.constant dense<0.000000e+00> : vector<8xf32>
    %339 = vector.multi_reduction <add>, %338, %cst_114 [1] : vector<8x128xf32> to vector<8xf32>
    %340 = vector.shape_cast %339 : vector<8xf32> to vector<8x1xf32>
    %cst_115 = arith.constant 1.000000e-10 : f32
    %341 = vector.broadcast %cst_115 : f32 to vector<8x1xf32>
    %342 = arith.addf %340, %341 : vector<8x1xf32>
    %343 = tpu.reciprocal %342 {approx = true} : vector<8x1xf32> -> vector<8x1xf32>
    %344 = vector.broadcast %343 : vector<8x1xf32> to vector<8x128xf32>
    %345 = arith.mulf %314, %344 : vector<8x128xf32>
    %cst_116 = arith.constant dense<0.000000e+00> : vector<128xf32>
    %346 = vector.multi_reduction <add>, %345, %cst_116 [0] : vector<8x128xf32> to vector<128xf32>
    %347 = vector.shape_cast %346 : vector<128xf32> to vector<1x128xf32>
    %cst_117 = arith.constant 1.000000e-10 : f32
    %348 = vector.broadcast %cst_117 : f32 to vector<1x128xf32>
    %349 = arith.addf %347, %348 : vector<1x128xf32>
    %350 = tpu.reciprocal %349 {approx = true} : vector<1x128xf32> -> vector<1x128xf32>
    %351 = vector.broadcast %350 : vector<1x128xf32> to vector<8x128xf32>
    %352 = arith.mulf %314, %351 : vector<8x128xf32>
    %cst_118 = arith.constant dense<0.000000e+00> : vector<8xf32>
    %353 = vector.multi_reduction <add>, %352, %cst_118 [1] : vector<8x128xf32> to vector<8xf32>
    %354 = vector.shape_cast %353 : vector<8xf32> to vector<8x1xf32>
    %cst_119 = arith.constant 1.000000e-10 : f32
    %355 = vector.broadcast %cst_119 : f32 to vector<8x1xf32>
    %356 = arith.addf %354, %355 : vector<8x1xf32>
    %357 = tpu.reciprocal %356 {approx = true} : vector<8x1xf32> -> vector<8x1xf32>
    %358 = vector.broadcast %357 : vector<8x1xf32> to vector<8x128xf32>
    %359 = arith.mulf %314, %358 : vector<8x128xf32>
    %cst_120 = arith.constant dense<0.000000e+00> : vector<128xf32>
    %360 = vector.multi_reduction <add>, %359, %cst_120 [0] : vector<8x128xf32> to vector<128xf32>
    %361 = vector.shape_cast %360 : vector<128xf32> to vector<1x128xf32>
    %cst_121 = arith.constant 1.000000e-10 : f32
    %362 = vector.broadcast %cst_121 : f32 to vector<1x128xf32>
    %363 = arith.addf %361, %362 : vector<1x128xf32>
    %364 = tpu.reciprocal %363 {approx = true} : vector<1x128xf32> -> vector<1x128xf32>
    %365 = vector.broadcast %364 : vector<1x128xf32> to vector<8x128xf32>
    %366 = arith.mulf %314, %365 : vector<8x128xf32>
    %cst_122 = arith.constant dense<0.000000e+00> : vector<8xf32>
    %367 = vector.multi_reduction <add>, %366, %cst_122 [1] : vector<8x128xf32> to vector<8xf32>
    %368 = vector.shape_cast %367 : vector<8xf32> to vector<8x1xf32>
    %cst_123 = arith.constant 1.000000e-10 : f32
    %369 = vector.broadcast %cst_123 : f32 to vector<8x1xf32>
    %370 = arith.addf %368, %369 : vector<8x1xf32>
    %371 = tpu.reciprocal %370 {approx = true} : vector<8x1xf32> -> vector<8x1xf32>
    %372 = vector.broadcast %371 : vector<8x1xf32> to vector<8x128xf32>
    %373 = arith.mulf %314, %372 : vector<8x128xf32>
    %cst_124 = arith.constant dense<0.000000e+00> : vector<128xf32>
    %374 = vector.multi_reduction <add>, %373, %cst_124 [0] : vector<8x128xf32> to vector<128xf32>
    %375 = vector.shape_cast %374 : vector<128xf32> to vector<1x128xf32>
    %cst_125 = arith.constant 1.000000e-10 : f32
    %376 = vector.broadcast %cst_125 : f32 to vector<1x128xf32>
    %377 = arith.addf %375, %376 : vector<1x128xf32>
    %378 = tpu.reciprocal %377 {approx = true} : vector<1x128xf32> -> vector<1x128xf32>
    %379 = vector.broadcast %378 : vector<1x128xf32> to vector<8x128xf32>
    %380 = arith.mulf %314, %379 : vector<8x128xf32>
    %cst_126 = arith.constant dense<0.000000e+00> : vector<8xf32>
    %381 = vector.multi_reduction <add>, %380, %cst_126 [1] : vector<8x128xf32> to vector<8xf32>
    %382 = vector.shape_cast %381 : vector<8xf32> to vector<8x1xf32>
    %cst_127 = arith.constant 1.000000e-10 : f32
    %383 = vector.broadcast %cst_127 : f32 to vector<8x1xf32>
    %384 = arith.addf %382, %383 : vector<8x1xf32>
    %385 = tpu.reciprocal %384 {approx = true} : vector<8x1xf32> -> vector<8x1xf32>
    %386 = vector.broadcast %385 : vector<8x1xf32> to vector<8x128xf32>
    %387 = arith.mulf %314, %386 : vector<8x128xf32>
    %cst_128 = arith.constant dense<0.000000e+00> : vector<128xf32>
    %388 = vector.multi_reduction <add>, %387, %cst_128 [0] : vector<8x128xf32> to vector<128xf32>
    %389 = vector.shape_cast %388 : vector<128xf32> to vector<1x128xf32>
    %cst_129 = arith.constant 1.000000e-10 : f32
    %390 = vector.broadcast %cst_129 : f32 to vector<1x128xf32>
    %391 = arith.addf %389, %390 : vector<1x128xf32>
    %392 = tpu.reciprocal %391 {approx = true} : vector<1x128xf32> -> vector<1x128xf32>
    %393 = vector.broadcast %392 : vector<1x128xf32> to vector<8x128xf32>
    %394 = arith.mulf %314, %393 : vector<8x128xf32>
    %cst_130 = arith.constant dense<0.000000e+00> : vector<8xf32>
    %395 = vector.multi_reduction <add>, %394, %cst_130 [1] : vector<8x128xf32> to vector<8xf32>
    %396 = vector.shape_cast %395 : vector<8xf32> to vector<8x1xf32>
    %cst_131 = arith.constant 1.000000e-10 : f32
    %397 = vector.broadcast %cst_131 : f32 to vector<8x1xf32>
    %398 = arith.addf %396, %397 : vector<8x1xf32>
    %399 = tpu.reciprocal %398 {approx = true} : vector<8x1xf32> -> vector<8x1xf32>
    %400 = vector.broadcast %399 : vector<8x1xf32> to vector<8x128xf32>
    %401 = arith.mulf %314, %400 : vector<8x128xf32>
    %cst_132 = arith.constant dense<0.000000e+00> : vector<128xf32>
    %402 = vector.multi_reduction <add>, %401, %cst_132 [0] : vector<8x128xf32> to vector<128xf32>
    %403 = vector.shape_cast %402 : vector<128xf32> to vector<1x128xf32>
    %cst_133 = arith.constant 1.000000e-10 : f32
    %404 = vector.broadcast %cst_133 : f32 to vector<1x128xf32>
    %405 = arith.addf %403, %404 : vector<1x128xf32>
    %406 = tpu.reciprocal %405 {approx = true} : vector<1x128xf32> -> vector<1x128xf32>
    %407 = vector.broadcast %406 : vector<1x128xf32> to vector<8x128xf32>
    %408 = arith.mulf %314, %407 : vector<8x128xf32>
    %cst_134 = arith.constant dense<0.000000e+00> : vector<8xf32>
    %409 = vector.multi_reduction <add>, %408, %cst_134 [1] : vector<8x128xf32> to vector<8xf32>
    %410 = vector.shape_cast %409 : vector<8xf32> to vector<8x1xf32>
    %cst_135 = arith.constant 1.000000e-10 : f32
    %411 = vector.broadcast %cst_135 : f32 to vector<8x1xf32>
    %412 = arith.addf %410, %411 : vector<8x1xf32>
    %413 = tpu.reciprocal %412 {approx = true} : vector<8x1xf32> -> vector<8x1xf32>
    %414 = vector.broadcast %413 : vector<8x1xf32> to vector<8x128xf32>
    %415 = arith.mulf %314, %414 : vector<8x128xf32>
    %cst_136 = arith.constant dense<0.000000e+00> : vector<128xf32>
    %416 = vector.multi_reduction <add>, %415, %cst_136 [0] : vector<8x128xf32> to vector<128xf32>
    %417 = vector.shape_cast %416 : vector<128xf32> to vector<1x128xf32>
    %cst_137 = arith.constant 1.000000e-10 : f32
    %418 = vector.broadcast %cst_137 : f32 to vector<1x128xf32>
    %419 = arith.addf %417, %418 : vector<1x128xf32>
    %420 = tpu.reciprocal %419 {approx = true} : vector<1x128xf32> -> vector<1x128xf32>
    %421 = vector.broadcast %420 : vector<1x128xf32> to vector<8x128xf32>
    %422 = arith.mulf %314, %421 : vector<8x128xf32>
    %cst_138 = arith.constant dense<0.000000e+00> : vector<8xf32>
    %423 = vector.multi_reduction <add>, %422, %cst_138 [1] : vector<8x128xf32> to vector<8xf32>
    %424 = vector.shape_cast %423 : vector<8xf32> to vector<8x1xf32>
    %cst_139 = arith.constant 1.000000e-10 : f32
    %425 = vector.broadcast %cst_139 : f32 to vector<8x1xf32>
    %426 = arith.addf %424, %425 : vector<8x1xf32>
    %427 = tpu.reciprocal %426 {approx = true} : vector<8x1xf32> -> vector<8x1xf32>
    %428 = vector.broadcast %427 : vector<8x1xf32> to vector<8x128xf32>
    %429 = arith.mulf %314, %428 : vector<8x128xf32>
    %cst_140 = arith.constant dense<0.000000e+00> : vector<128xf32>
    %430 = vector.multi_reduction <add>, %429, %cst_140 [0] : vector<8x128xf32> to vector<128xf32>
    %431 = vector.shape_cast %430 : vector<128xf32> to vector<1x128xf32>
    %cst_141 = arith.constant 1.000000e-10 : f32
    %432 = vector.broadcast %cst_141 : f32 to vector<1x128xf32>
    %433 = arith.addf %431, %432 : vector<1x128xf32>
    %434 = tpu.reciprocal %433 {approx = true} : vector<1x128xf32> -> vector<1x128xf32>
    %435 = vector.broadcast %434 : vector<1x128xf32> to vector<8x128xf32>
    %436 = arith.mulf %314, %435 : vector<8x128xf32>
    %cst_142 = arith.constant dense<0.000000e+00> : vector<8xf32>
    %437 = vector.multi_reduction <add>, %436, %cst_142 [1] : vector<8x128xf32> to vector<8xf32>
    %438 = vector.shape_cast %437 : vector<8xf32> to vector<8x1xf32>
    %cst_143 = arith.constant 1.000000e-10 : f32
    %439 = vector.broadcast %cst_143 : f32 to vector<8x1xf32>
    %440 = arith.addf %438, %439 : vector<8x1xf32>
    %441 = tpu.reciprocal %440 {approx = true} : vector<8x1xf32> -> vector<8x1xf32>
    %442 = vector.broadcast %441 : vector<8x1xf32> to vector<8x128xf32>
    %443 = arith.mulf %314, %442 : vector<8x128xf32>
    %cst_144 = arith.constant dense<0.000000e+00> : vector<128xf32>
    %444 = vector.multi_reduction <add>, %443, %cst_144 [0] : vector<8x128xf32> to vector<128xf32>
    %445 = vector.shape_cast %444 : vector<128xf32> to vector<1x128xf32>
    %cst_145 = arith.constant 1.000000e-10 : f32
    %446 = vector.broadcast %cst_145 : f32 to vector<1x128xf32>
    %447 = arith.addf %445, %446 : vector<1x128xf32>
    %cst_146 = arith.constant 1.000000e+00 : f32
    %448 = vector.broadcast %cst_146 : f32 to vector<1x128xf32>
    %449 = arith.divf %448, %447 : vector<1x128xf32>
    %450 = vector.broadcast %449 : vector<1x128xf32> to vector<8x128xf32>
    %451 = arith.mulf %314, %450 : vector<8x128xf32>
    %cst_147 = arith.constant dense<0.000000e+00> : vector<8xf32>
    %452 = vector.multi_reduction <add>, %451, %cst_147 [1] : vector<8x128xf32> to vector<8xf32>
    %453 = vector.shape_cast %452 : vector<8xf32> to vector<8x1xf32>
    %cst_148 = arith.constant 1.000000e-10 : f32
    %454 = vector.broadcast %cst_148 : f32 to vector<8x1xf32>
    %455 = arith.addf %453, %454 : vector<8x1xf32>
    %cst_149 = arith.constant 1.000000e+00 : f32
    %456 = vector.broadcast %cst_149 : f32 to vector<8x1xf32>
    %457 = arith.divf %456, %455 : vector<8x1xf32>
    %458 = vector.broadcast %449 : vector<1x128xf32> to vector<8x128xf32>
    %459 = arith.mulf %314, %458 : vector<8x128xf32>
    %460 = vector.broadcast %457 : vector<8x1xf32> to vector<8x128xf32>
    %461 = arith.mulf %459, %460 : vector<8x128xf32>
    %462 = arith.truncf %461 : vector<8x128xf32> to vector<8x128xbf16>
    %cst_150 = arith.constant dense<0.000000e+00> : vector<8x37xf32>
    %463 = tpu.matmul %462, %249, %cst_150 {dimension_numbers = #tpu.dot_dimension_numbers<[1], [0], [0], [1], [0, 0, 1, 1], [], []>} : vector<8x128xbf16>, vector<128x37xbf16>, vector<8x37xf32> -> vector<8x37xf32>
    %464 = vector.extract_strided_slice %463 {offsets = [0, 36], sizes = [8, 1], strides = [1, 1]} : vector<8x37xf32> to vector<8x1xf32>
    %cst_151 = arith.constant 5.000000e-02 : f32
    %465 = vector.broadcast %cst_151 : f32 to vector<8x1xf32>
    %466 = arith.cmpf ogt, %464, %465 : vector<8x1xf32>
    %cst_152 = arith.constant 0.000000e+00 : f32
    %467 = vector.shape_cast %466 : vector<8x1xi1> to vector<8x1xi1>
    %468 = vector.broadcast %467 : vector<8x1xi1> to vector<8x37xi1>
    %469 = vector.broadcast %cst_152 : f32 to vector<8x37xf32>
    %470 = arith.select %468, %463, %469 : vector<8x37xi1>, vector<8x37xf32>
    %c1_153 = arith.constant 1 : index
    %c0_154 = arith.constant 0 : index
    %c0_155 = arith.constant 0 : index
    %471 = vector.load %arg6[%c1_153, %c0_154, %c0_155] : memref<2x8x37xf32, #tpu.memory_space<vmem>>, vector<1x8x37xf32>
    %472 = vector.shape_cast %471 : vector<1x8x37xf32> to vector<8x37xf32>
    %473 = vector.shape_cast %470 : vector<8x37xf32> to vector<1x8x37xf32>
    tpu.vector_store %arg6[%c1_153, %c0_154, %c0_155], %473 {strides = array<i32>} : memref<2x8x37xf32, #tpu.memory_space<vmem>>, vector<1x8x37xf32>,
    %c1_156 = arith.constant 1 : index
    %c0_157 = arith.constant 0 : index
    %c0_158 = arith.constant 0 : index
    %474 = vector.load %arg7[%c1_156, %c0_157, %c0_158] : memref<2x8x128xf32, #tpu.memory_space<vmem>>, vector<1x8x128xf32>
    %475 = vector.shape_cast %474 : vector<1x8x128xf32> to vector<8x128xf32>
    %476 = vector.shape_cast %461 : vector<8x128xf32> to vector<1x8x128xf32>
    tpu.vector_store %arg7[%c1_156, %c0_157, %c0_158], %476 {strides = array<i32>} : memref<2x8x128xf32, #tpu.memory_space<vmem>>, vector<1x8x128xf32>,
    return
  }
  func.func @transform_0(%arg0: i32) -> (i32, i32, i32) {
    %c0_i32 = arith.constant 0 : i32
    %c0_i32_0 = arith.constant 0 : i32
    %c0_i32_1 = arith.constant 0 : i32
    return %arg0, %c0_i32, %c0_i32_0 : i32, i32, i32
  }
  func.func @transform_1(%arg0: i32) -> (i32, i32, i32) {
    %c0_i32 = arith.constant 0 : i32
    %c0_i32_0 = arith.constant 0 : i32
    %c0_i32_1 = arith.constant 0 : i32
    return %arg0, %c0_i32, %c0_i32_0 : i32, i32, i32
  }
  func.func @transform_2(%arg0: i32) -> (i32, i32, i32) {
    %c0_i32 = arith.constant 0 : i32
    %c0_i32_0 = arith.constant 0 : i32
    %c0_i32_1 = arith.constant 0 : i32
    return %arg0, %c0_i32, %c0_i32_0 : i32, i32, i32
  }
  func.func @transform_3(%arg0: i32) -> (i32, i32, i32) {
    %c0_i32 = arith.constant 0 : i32
    %c0_i32_0 = arith.constant 0 : i32
    %c0_i32_1 = arith.constant 0 : i32
    return %arg0, %c0_i32, %c0_i32_0 : i32, i32, i32
  }
  func.func @transform_4(%arg0: i32) -> (i32, i32, i32) {
    %c0_i32 = arith.constant 0 : i32
    %c0_i32_0 = arith.constant 0 : i32
    %c0_i32_1 = arith.constant 0 : i32
    return %arg0, %c0_i32, %c0_i32_0 : i32, i32, i32
  }
  func.func @transform_5(%arg0: i32) -> (i32, i32, i32) {
    %c0_i32 = arith.constant 0 : i32
    %c0_i32_0 = arith.constant 0 : i32
    %c0_i32_1 = arith.constant 0 : i32
    return %arg0, %c0_i32, %c0_i32_0 : i32, i32, i32
  }
  func.func @transform_6(%arg0: i32) -> (i32, i32, i32) {
    %c0_i32 = arith.constant 0 : i32
    %c0_i32_0 = arith.constant 0 : i32
    %c0_i32_1 = arith.constant 0 : i32
    return %arg0, %c0_i32, %c0_i32_0 : i32, i32, i32
  }
}

</mosaic_0001>

<llo_original>
// kernel: differentiable_nms.1
$region0: #{differentiable_nms.1}
  #allocation0 [shape = 'u32[]', space=smem, size = 0x4, offset = 0x4, fixed_abs, tag = 'smem constant byte address 0x4 - core index']
  #allocation1 [shape = 'u32[144,128]{1,0:T(1,128)}', space=vmem, size = 0x12000, scoped, tag = 'internal scratch']
  %s0 = inlined_call_operand.vmem [shape: f32[2,3,128], index: 0, kind: input, shape index: {}]
  %s1 = inlined_call_operand.vmem [shape: f32[2,32,128], index: 1, kind: input, shape index: {}]
  %s2 = inlined_call_operand.vmem [shape: bf16[2,128,37], index: 2, kind: input, shape index: {}]
  %s3 = inlined_call_operand.vmem [shape: f32[2,8,32], index: 3, kind: input, shape index: {}]
  %s4 = inlined_call_operand.vmem [shape: f32[2,2,8], index: 4, kind: input, shape index: {}]
  %s5 = inlined_call_operand.vmem [shape: f32[2,8,37], index: 5, kind: output, shape index: {0}]
  %s6 = inlined_call_operand.vmem [shape: f32[2,8,128], index: 6, kind: output, shape index: {1}]
  %7 = xla_tuple %s5, %s6
  %s8 = sld [smem:[#allocation0]]
  $region38: #{differentiable_nms.1} parent=0
    _
  %s10 = ssub.s32 1, %s8
  %s11 = scalar_select 0, %s10, %s8
  // Predicated region
  $region2: #{differentiable_nms.1} parent=0 // pred_check
    _
  $region3: #{differentiable_nms.1} parent=0 // pred_check_branch
    %13 = sbr.rel (0) target = $region5
  $region4: #{differentiable_nms.1} parent=0 // pred_region
    _
  $region5: #{differentiable_nms.1} parent=0 // pred_fallthru
    _
  // Predicated region
  $region6: #{differentiable_nms.1} parent=0 // pred_check
    _
  $region7: #{differentiable_nms.1} parent=0 // pred_check_branch
    %15 = sbr.rel (0) target = $region9
  $region8: #{differentiable_nms.1} parent=0 // pred_region
    _
  $region9: #{differentiable_nms.1} parent=0 // pred_fallthru
    _
  // Predicated region
  $region10: #{differentiable_nms.1} parent=0 // pred_check
    _
  $region11: #{differentiable_nms.1} parent=0 // pred_check_branch
    %17 = sbr.rel (0) target = $region13
  $region12: #{differentiable_nms.1} parent=0 // pred_region
    _
  $region13: #{differentiable_nms.1} parent=0 // pred_fallthru
    _
  // Predicated region
  $region14: #{differentiable_nms.1} parent=0 // pred_check
    _
  $region15: #{differentiable_nms.1} parent=0 // pred_check_branch
    %19 = sbr.rel (0) target = $region17
  $region16: #{differentiable_nms.1} parent=0 // pred_region
    _
  $region17: #{differentiable_nms.1} parent=0 // pred_fallthru
    _
  // Predicated region
  $region18: #{differentiable_nms.1} parent=0 // pred_check
    _
  $region19: #{differentiable_nms.1} parent=0 // pred_check_branch
    %21 = sbr.rel (0) target = $region21
  $region20: #{differentiable_nms.1} parent=0 // pred_region
    _
  $region21: #{differentiable_nms.1} parent=0 // pred_fallthru
    _
  %v23 = vlaneseq
  %v24 = vand.u32 %v23, 127
  %vm25 = vcmp.lt.s32.totalorder %v24, 32
  %v26 = vsel %vm25, 1, 0
  %v27 = vcvt.s32.f32 %v26
  %v28 = vld [vmem:[%s0] sm:$0x7]
  %v29 = vld [vmem:[%s1] sm:$0xff]
  %v30 = vld [vmem:[%s1 + $0x8] sm:$0xff]
  %v31 = vld [vmem:[%s1 + $0x10] sm:$0xff]
  %v32 = vld [vmem:[%s1 + $0x18] sm:$0xff]
  %v33 = vld [vmem:[%s2] sm:$0xf]
  %v34 = vld [vmem:[%s2 + $0x4] sm:$0xf]
  %v35 = vld [vmem:[%s2 + $0x8] sm:$0xf]
  %v36 = vld [vmem:[%s2 + $0xc] sm:$0xf]
  %v37 = vld [vmem:[%s2 + $0x10] sm:$0xf]
  %v38 = vld [vmem:[%s2 + $0x14] sm:$0xf]
  %v39 = vld [vmem:[%s2 + $0x18] sm:$0xf]
  %v40 = vld [vmem:[%s2 + $0x1c] sm:$0xf]
  %v41 = vld [vmem:[%s2 + $0x20] sm:$0xf]
  %v42 = vld [vmem:[%s2 + $0x24] sm:$0xf]
  %v43 = vld [vmem:[%s2 + $0x28] sm:$0xf]
  %v44 = vld [vmem:[%s2 + $0x2c] sm:$0xf]
  %v45 = vld [vmem:[%s2 + $0x30] sm:$0xf]
  %v46 = vld [vmem:[%s2 + $0x34] sm:$0xf]
  %v47 = vld [vmem:[%s2 + $0x38] sm:$0xf]
  %v48 = vld [vmem:[%s2 + $0x3c] sm:$0xf]
  %v49 = vld [vmem:[%s3] sm:$0xff]
  %v50 = vld [vmem:[%s4] sm:$0x3]
  %v51 = vmul.f32 %v29, %v29
  %v52 = vmul.f32 %v30, %v30
  %v53 = vmul.f32 %v31, %v31
  %v54 = vmul.f32 %v32, %v32
  %v55 = vadd.f32 %v51, %v52
  %v56 = vadd.f32 %v55, %v53
  %v57 = vadd.f32 %v56, %v54
  %v58 = vrot.slane %v57, 4
  %v59 = vadd.f32 %v57, %v58
  %v60 = vrot.slane %v59, 2
  %v61 = vadd.f32 %v59, %v60
  %v62 = vrot.slane %v61, 1
  %v63 = vadd.f32 %v61, %v62
  %v64 = vrsqrt.pop %v63
  %v65 = vmin.f32 %v64, 1e+12
  %v66 = vmul.f32 %v29, %v65
  %v67 = vmul.f32 %v30, %v65
  %v68 = vmul.f32 %v31, %v65
  %v69 = vmul.f32 %v32, %v65
  %v70 = vmul.f32 %v49, %v49
  %vm71 = vcmask 261120
  %v72 = vsel %vm71, %v70, 0.0
  %73 = vadd.xlane.f32.xlu0 %v72
  %v74 = vpop.xlane.xlu0 %73
  %v75 = vrsqrt.pop %v74
  %v76 = vmin.f32 %v75, 1e+12
  %v77 = vmul.f32 %v49, %v76
  %v79 = vsel %vm71, %v77, 0
  %81 = vmatprep.subr.mxu0 0.0
  %82 = vmatpush1.msra.mxu0 %v66
  %83 = vmatprep.subr.mxu0 0.0
  %84 = vmatpush1.msra.mxu0 %v67
  %85 = vmatprep.subr.mxu0 0.0
  %86 = vmatpush1.msra.mxu0 %v68
  %87 = vmatprep.subr.mxu0 0.0
  %88 = vmatpush1.msra.mxu0 %v69
  %89 = vmatprep.subr.mxu0 0.0
  %90 = vmatpush1.msra.mxu0 0.0
  %91 = vmatprep.subr.mxu0 0.0
  %92 = vmatpush1.msra.mxu0 0.0
  %93 = vmatprep.subr.mxu0 0.0
  %94 = vmatpush1.msra.mxu0 0.0
  %95 = vmatprep.subr.mxu0 0.0
  %96 = vmatpush1.msra.mxu0 0.0
  %97 = vmatprep.subr.mxu0 0.0
  %98 = vmatpush1.msra.mxu0 0.0
  %99 = vmatprep.subr.mxu0 0.0
  %100 = vmatpush1.msra.mxu0 0.0
  %101 = vmatprep.subr.mxu0 0.0
  %102 = vmatpush1.msra.mxu0 0.0
  %103 = vmatprep.subr.mxu0 0.0
  %104 = vmatpush1.msra.mxu0 0.0
  %105 = vmatprep.subr.mxu0 0.0
  %106 = vmatpush1.msra.mxu0 0.0
  %107 = vmatprep.subr.mxu0 0.0
  %108 = vmatpush1.msra.mxu0 0.0
  %109 = vmatprep.subr.mxu0 0.0
  %110 = vmatpush1.msra.mxu0 0.0
  %111 = vmatprep.subr.mxu0 0.0
  %112 = vmatpush1.msra.mxu0 0.0
  %113 = vmatprep.subr.mxu0 0.0
  %114 = vmatpush1.msra.mxu0 0.0
  %115 = vmatprep.subr.mxu0 0.0
  %116 = vmatpush1.msra.mxu0 0.0
  %117 = vmatprep.subr.mxu0 0.0
  %118 = vmatpush1.msra.mxu0 0.0
  %119 = vmatprep.subr.mxu0 0.0
  %120 = vmatpush1.msra.mxu0 0.0
  %121 = vmatprep.subr.mxu0 0.0
  %122 = vmatpush1.msra.mxu0 0.0
  %123 = vmatprep.subr.mxu0 0.0
  %124 = vmatpush1.msra.mxu0 0.0
  %125 = vmatprep.subr.mxu0 0.0
  %126 = vmatpush1.msra.mxu0 0.0
  %127 = vmatprep.subr.mxu0 0.0
  %128 = vmatpush1.msra.mxu0 0.0
  %129 = vmatprep.subr.mxu0 0.0
  %130 = vmatpush1.msra.mxu0 0.0
  %131 = vmatprep.subr.mxu0 0.0
  %132 = vmatpush1.msra.mxu0 0.0
  %133 = vmatprep.subr.mxu0 0.0
  %134 = vmatpush1.msra.mxu0 0.0
  %135 = vmatprep.subr.mxu0 0.0
  %136 = vmatpush1.msra.mxu0 0.0
  %137 = vmatprep.subr.mxu0 0.0
  %138 = vmatpush1.msra.mxu0 0.0
  %139 = vmatprep.subr.mxu0 0.0
  %140 = vmatpush1.msra.mxu0 0.0
  %141 = vmatprep.subr.mxu0 0.0
  %142 = vmatpush1.msra.mxu0 0.0
  %143 = vmatprep.subr.mxu0 0.0
  %144 = vmatpush1.msra.mxu0 0.0
  %145 = vmatprep.mubr.f32.mxu0 0.0
  %146 = vmatmul.mubr.f32.gmra.mrb[0].mxu0 %v79
  %v147 = vpop.f32.mrb[0].mxu0
  %v148 = vadd.f32 0.0, %v147
  %v149 = vpop.f32.mrb[0].mxu0
  %150 = vdwg.mxu0
  %v151 = vlaneseq
  %v152 = vshrl.u32 %v151, 7
  %v153 = vsub.s32 0, %v152
  %v154 = vrot.slane %v50, %v153
  %156 = vbcast.lane.b32.xlu0 %v154, 256
  %v157 = vpop.permute.xlu0 %156
  %v158 = vlaneseq
  %v159 = vshrl.u32 %v158, 7
  %v160 = vsub.s32 1, %v159
  %v161 = vrot.slane %v28, %v160
  %v162 = vsub.f32 %v157, %v161
  %v163 = vlaneseq
  %v164 = vshrl.u32 %v163, 7
  %v165 = vsub.s32 1, %v164
  %v166 = vrot.slane %v50, %v165
  %168 = vbcast.lane.b32.xlu0 %v166, 256
  %v169 = vpop.permute.xlu0 %168
  %v170 = vlaneseq
  %v171 = vshrl.u32 %v170, 7
  %v172 = vsub.s32 2, %v171
  %v173 = vrot.slane %v28, %v172
  %v174 = vsub.f32 %v169, %v173
  %v175 = vmul.f32 %v162, %v162
  %v176 = vmul.f32 %v174, %v174
  %v177 = vadd.f32 %v175, %v176
  %v178 = vrsqrt.pop %v177
  %v179 = vmul.f32 %v177, %v178
  %vm180 = vcmp.eq.f32.partialorder %v177, inf
  %v181 = vsel %vm180, %v177, %v179
  %vm182 = vcmp.eq.f32.partialorder %v177, 0.0
  %v183 = vand.u32 %v177, 2147483648
  %v184 = vsel %vm182, %v183, %v181
  %v185 = vmul.f32 %v184, %v27
  %186 = vmax.xlane.f32.xlu0 %v185
  %v187 = vpop.xlane.xlu0 %186
  %v188 = vrot.slane %v187, 4
  %v189 = vmax.f32 %v187, %v188
  %v190 = vrot.slane %v189, 2
  %v191 = vmax.f32 %v189, %v190
  %v192 = vrot.slane %v191, 1
  %v193 = vmax.f32 %v191, %v192
  %s194 = vtos %v193
  %s195 = smax.f32 %s194, 1e-10
  %v196 = vstv %s195
  %v197 = vrcp.pop %v196
  %s198 = vtos %v197
  %v199 = vstv %s198
  %v200 = vmul.f32 %v185, %v199
  %v201 = vsub.f32 1.0, %v28
  %v202 = vsub.f32 1.0, %v148
  %v203 = vlaneseq
  %v204 = vshrl.u32 %v203, 7
  %v205 = vsub.s32 0, %v204
  %v206 = vrot.slane %v201, %v205
  %v207 = vadd.f32 %v206, %v202
  %v208 = vadd.f32 %v207, %v200
  %v209 = vmul.f32 %v208, -10.0
  %v210 = vmul.f32 %v209, 1.442695
  %v211 = vpow.pop %v210
  %v212 = vmul.f32 %v211, %v27
  %v213 = vrot.slane %v212, 4
  %v214 = vadd.f32 %v212, %v213
  %v215 = vrot.slane %v214, 2
  %v216 = vadd.f32 %v214, %v215
  %v217 = vrot.slane %v216, 1
  %v218 = vadd.f32 %v216, %v217
  %v219 = vadd.f32 %v218, 1e-10
  %v220 = vrcp.pop %v219
  %v221 = vmul.f32 %v212, %v220
  %222 = vadd.xlane.f32.xlu0 %v221
  %v223 = vpop.xlane.xlu0 %222
  %v224 = vadd.f32 %v223, 1e-10
  %v225 = vrcp.pop %v224
  %v226 = vmul.f32 %v212, %v225
  %v227 = vrot.slane %v226, 4
  %v228 = vadd.f32 %v226, %v227
  %v229 = vrot.slane %v228, 2
  %v230 = vadd.f32 %v228, %v229
  %v231 = vrot.slane %v230, 1
  %v232 = vadd.f32 %v230, %v231
  %v233 = vadd.f32 %v232, 1e-10
  %v234 = vrcp.pop %v233
  %v235 = vmul.f32 %v212, %v234
  %236 = vadd.xlane.f32.xlu0 %v235
  %v237 = vpop.xlane.xlu0 %236
  %v238 = vadd.f32 %v237, 1e-10
  %v239 = vrcp.pop %v238
  %v240 = vmul.f32 %v212, %v239
  %v241 = vrot.slane %v240, 4
  %v242 = vadd.f32 %v240, %v241
  %v243 = vrot.slane %v242, 2
  %v244 = vadd.f32 %v242, %v243
  %v245 = vrot.slane %v244, 1
  %v246 = vadd.f32 %v244, %v245
  %v247 = vadd.f32 %v246, 1e-10
  %v248 = vrcp.pop %v247
  %v249 = vmul.f32 %v212, %v248
  %250 = vadd.xlane.f32.xlu0 %v249
  %v251 = vpop.xlane.xlu0 %250
  %v252 = vadd.f32 %v251, 1e-10
  %v253 = vrcp.pop %v252
  %v254 = vmul.f32 %v212, %v253
  %v255 = vrot.slane %v254, 4
  %v256 = vadd.f32 %v254, %v255
  %v257 = vrot.slane %v256, 2
  %v258 = vadd.f32 %v256, %v257
  %v259 = vrot.slane %v258, 1
  %v260 = vadd.f32 %v258, %v259
  %v261 = vadd.f32 %v260, 1e-10
  %v262 = vrcp.pop %v261
  %v263 = vmul.f32 %v212, %v262
  %264 = vadd.xlane.f32.xlu0 %v263
  %v265 = vpop.xlane.xlu0 %264
  %v266 = vadd.f32 %v265, 1e-10
  %v267 = vrcp.pop %v266
  %v268 = vmul.f32 %v212, %v267
  %v269 = vrot.slane %v268, 4
  %v270 = vadd.f32 %v268, %v269
  %v271 = vrot.slane %v270, 2
  %v272 = vadd.f32 %v270, %v271
  %v273 = vrot.slane %v272, 1
  %v274 = vadd.f32 %v272, %v273
  %v275 = vadd.f32 %v274, 1e-10
  %v276 = vrcp.pop %v275
  %v277 = vmul.f32 %v212, %v276
  %278 = vadd.xlane.f32.xlu0 %v277
  %v279 = vpop.xlane.xlu0 %278
  %v280 = vadd.f32 %v279, 1e-10
  %v281 = vrcp.pop %v280
  %v282 = vmul.f32 %v212, %v281
  %v283 = vrot.slane %v282, 4
  %v284 = vadd.f32 %v282, %v283
  %v285 = vrot.slane %v284, 2
  %v286 = vadd.f32 %v284, %v285
  %v287 = vrot.slane %v286, 1
  %v288 = vadd.f32 %v286, %v287
  %v289 = vadd.f32 %v288, 1e-10
  %v290 = vrcp.pop %v289
  %v291 = vmul.f32 %v212, %v290
  %292 = vadd.xlane.f32.xlu0 %v291
  %v293 = vpop.xlane.xlu0 %292
  %v294 = vadd.f32 %v293, 1e-10
  %v295 = vrcp.pop %v294
  %v296 = vmul.f32 %v212, %v295
  %v297 = vrot.slane %v296, 4
  %v298 = vadd.f32 %v296, %v297
  %v299 = vrot.slane %v298, 2
  %v300 = vadd.f32 %v298, %v299
  %v301 = vrot.slane %v300, 1
  %v302 = vadd.f32 %v300, %v301
  %v303 = vadd.f32 %v302, 1e-10
  %v304 = vrcp.pop %v303
  %v305 = vmul.f32 %v212, %v304
  %306 = vadd.xlane.f32.xlu0 %v305
  %v307 = vpop.xlane.xlu0 %306
  %v308 = vadd.f32 %v307, 1e-10
  %v309 = vrcp.pop %v308
  %v310 = vmul.f32 %v212, %v309
  %v311 = vrot.slane %v310, 4
  %v312 = vadd.f32 %v310, %v311
  %v313 = vrot.slane %v312, 2
  %v314 = vadd.f32 %v312, %v313
  %v315 = vrot.slane %v314, 1
  %v316 = vadd.f32 %v314, %v315
  %v317 = vadd.f32 %v316, 1e-10
  %v318 = vrcp.pop %v317
  %v319 = vmul.f32 %v212, %v318
  %320 = vadd.xlane.f32.xlu0 %v319
  %v321 = vpop.xlane.xlu0 %320
  %v322 = vadd.f32 %v321, 1e-10
  %v323 = vrcp.pop %v322
  %v324 = vmul.f32 %v212, %v323
  %v325 = vrot.slane %v324, 4
  %v326 = vadd.f32 %v324, %v325
  %v327 = vrot.slane %v326, 2
  %v328 = vadd.f32 %v326, %v327
  %v329 = vrot.slane %v328, 1
  %v330 = vadd.f32 %v328, %v329
  %v331 = vadd.f32 %v330, 1e-10
  %v332 = vrcp.pop %v331
  %v333 = vmul.f32 %v212, %v332
  %334 = vadd.xlane.f32.xlu0 %v333
  %v335 = vpop.xlane.xlu0 %334
  %v336 = vadd.f32 %v335, 1e-10
  %v337 = vrcp.pop %v336
  %v338 = vmul.f32 %v212, %v337
  %v339 = vrot.slane %v338, 4
  %v340 = vadd.f32 %v338, %v339
  %v341 = vrot.slane %v340, 2
  %v342 = vadd.f32 %v340, %v341
  %v343 = vrot.slane %v342, 1
  %v344 = vadd.f32 %v342, %v343
  %v345 = vadd.f32 %v344, 1e-10
  %v346 = vrcp.pop %v345
  %v347 = vmul.f32 1.0, %v346
  %v348 = vmul.f32 %v212, %v347
  %349 = vadd.xlane.f32.xlu0 %v348
  %v350 = vpop.xlane.xlu0 %349
  %v351 = vadd.f32 %v350, 1e-10
  %v352 = vrcp.pop %v351
  %v353 = vmul.f32 1.0, %v352
  %v354 = vmul.f32 %v348, %v353
  %v355 = vpack.c.bf16 %v354, %v354
  %v372 = vunpack.c.l.b16 %v33
  %v373 = vunpack.c.l.b16 %v34
  %v374 = vunpack.c.l.b16 %v35
  %v375 = vunpack.c.l.b16 %v36
  %v376 = vunpack.c.l.b16 %v37
  %v377 = vunpack.c.l.b16 %v38
  %v378 = vunpack.c.l.b16 %v39
  %v379 = vunpack.c.l.b16 %v40
  %v380 = vunpack.c.l.b16 %v41
  %v381 = vunpack.c.l.b16 %v42
  %v382 = vunpack.c.l.b16 %v43
  %v383 = vunpack.c.l.b16 %v44
  %v384 = vunpack.c.l.b16 %v45
  %v385 = vunpack.c.l.b16 %v46
  %v386 = vunpack.c.l.b16 %v47
  %v387 = vunpack.c.l.b16 %v48
  %v388 = vpack.c.b16 %v373, %v372
  %v389 = vpack.c.b16 %v375, %v374
  %v390 = vpack.c.b16 %v377, %v376
  %v391 = vpack.c.b16 %v379, %v378
  %v392 = vpack.c.b16 %v381, %v380
  %v393 = vpack.c.b16 %v383, %v382
  %v394 = vpack.c.b16 %v385, %v384
  %v395 = vpack.c.b16 %v387, %v386
  %404 = vmatprep.subr.bf16.mxu0 0
  %405 = vmatpush1.bf16.msra.mxu0 %v388
  %406 = vmatprep.subr.bf16.mxu0 0
  %407 = vmatpush1.bf16.msra.mxu0 %v389
  %408 = vmatprep.subr.bf16.mxu0 0
  %409 = vmatpush1.bf16.msra.mxu0 %v390
  %410 = vmatprep.subr.bf16.mxu0 0
  %411 = vmatpush1.bf16.msra.mxu0 %v391
  %412 = vmatprep.subr.bf16.mxu0 0
  %413 = vmatpush1.bf16.msra.mxu0 %v392
  %414 = vmatprep.subr.bf16.mxu0 0
  %415 = vmatpush1.bf16.msra.mxu0 %v393
  %416 = vmatprep.subr.bf16.mxu0 0
  %417 = vmatpush1.bf16.msra.mxu0 %v394
  %418 = vmatprep.subr.bf16.mxu0 0
  %419 = vmatpush1.bf16.msra.mxu0 %v395
  %420 = vmatprep.subr.bf16.mxu0 0
  %421 = vmatpush1.bf16.msra.mxu0 0
  %422 = vmatprep.subr.bf16.mxu0 0
  %423 = vmatpush1.bf16.msra.mxu0 0
  %424 = vmatprep.subr.bf16.mxu0 0
  %425 = vmatpush1.bf16.msra.mxu0 0
  %426 = vmatprep.subr.bf16.mxu0 0
  %427 = vmatpush1.bf16.msra.mxu0 0
  %428 = vmatprep.subr.bf16.mxu0 0
  %429 = vmatpush1.bf16.msra.mxu0 0
  %430 = vmatprep.subr.bf16.mxu0 0
  %431 = vmatpush1.bf16.msra.mxu0 0
  %432 = vmatprep.subr.bf16.mxu0 0
  %433 = vmatpush1.bf16.msra.mxu0 0
  %434 = vmatprep.subr.bf16.mxu0 0
  %435 = vmatpush1.bf16.msra.mxu0 0
  %436 = vmatprep.mubr.bf16.mxu0 0
  %437 = vmatmul.mubr.bf16.gmra.mrb[0].mxu0 %v355
  %v438 = vpop.f32.mrb[0].mxu0
  %v439 = vadd.f32 0.0, %v438
  %v440 = vpop.f32.mrb[0].mxu0
  %v441 = vpop.f32.mrb[0].mxu0
  %v442 = vpop.f32.mrb[0].mxu0
  %443 = vdwg.mxu0
  %vm444 = vcmp.gt.f32.partialorder %v439, 0.05
  %v445 = vsel %vm444, 1, 0
  %446 = vset.pattern.permute.xlu0 36
  %447 = vperm.xlu0 %446, %v445
  %v448 = vpop.permute.xlu0 %447
  %vm449 = vcmp.eq.s32.totalorder %v448, 1
  %v450 = vsel %vm449, %v439, 0.0
  %vm451 = vcmask 302080
  %452 = vst.msk [vmem:[%s5] sm:$0xff] %vm451, %v450
  %453 = vst [vmem:[%s6] sm:$0xff] %v354
  %s454 = scalar_lea.vmem %s0, 4
  %v455 = vld [vmem:[%s454] sm:$0x7]
  %s456 = scalar_lea.vmem %s1, 32
  %v457 = vld [vmem:[%s456] sm:$0xff]
  %v458 = vld [vmem:[%s456 + $0x8] sm:$0xff]
  %v459 = vld [vmem:[%s456 + $0x10] sm:$0xff]
  %v460 = vld [vmem:[%s456 + $0x18] sm:$0xff]
  %s461 = scalar_lea.vmem %s2, 64
  %v462 = vld [vmem:[%s461] sm:$0xf]
  %v463 = vld [vmem:[%s461 + $0x4] sm:$0xf]
  %v464 = vld [vmem:[%s461 + $0x8] sm:$0xf]
  %v465 = vld [vmem:[%s461 + $0xc] sm:$0xf]
  %v466 = vld [vmem:[%s461 + $0x10] sm:$0xf]
  %v467 = vld [vmem:[%s461 + $0x14] sm:$0xf]
  %v468 = vld [vmem:[%s461 + $0x18] sm:$0xf]
  %v469 = vld [vmem:[%s461 + $0x1c] sm:$0xf]
  %v470 = vld [vmem:[%s461 + $0x20] sm:$0xf]
  %v471 = vld [vmem:[%s461 + $0x24] sm:$0xf]
  %v472 = vld [vmem:[%s461 + $0x28] sm:$0xf]
  %v473 = vld [vmem:[%s461 + $0x2c] sm:$0xf]
  %v474 = vld [vmem:[%s461 + $0x30] sm:$0xf]
  %v475 = vld [vmem:[%s461 + $0x34] sm:$0xf]
  %v476 = vld [vmem:[%s461 + $0x38] sm:$0xf]
  %v477 = vld [vmem:[%s461 + $0x3c] sm:$0xf]
  %s478 = scalar_lea.vmem %s3, 8
  %v479 = vld [vmem:[%s478] sm:$0xff]
  %s480 = scalar_lea.vmem %s4, 2
  %v481 = vld [vmem:[%s480] sm:$0x3]
  %v482 = vmul.f32 %v457, %v457
  %v483 = vmul.f32 %v458, %v458
  %v484 = vmul.f32 %v459, %v459
  %v485 = vmul.f32 %v460, %v460
  %v486 = vadd.f32 %v482, %v483
  %v487 = vadd.f32 %v486, %v484
  %v488 = vadd.f32 %v487, %v485
  %v489 = vrot.slane %v488, 4
  %v490 = vadd.f32 %v488, %v489
  %v491 = vrot.slane %v490, 2
  %v492 = vadd.f32 %v490, %v491
  %v493 = vrot.slane %v492, 1
  %v494 = vadd.f32 %v492, %v493
  %v495 = vrsqrt.pop %v494
  %v496 = vmin.f32 %v495, 1e+12
  %v497 = vmul.f32 %v457, %v496
  %v498 = vmul.f32 %v458, %v496
  %v499 = vmul.f32 %v459, %v496
  %v500 = vmul.f32 %v460, %v496
  %v501 = vmul.f32 %v479, %v479
  %v502 = vsel %vm71, %v501, 0.0
  %503 = vadd.xlane.f32.xlu0 %v502
  %v504 = vpop.xlane.xlu0 %503
  %v505 = vrsqrt.pop %v504
  %v506 = vmin.f32 %v505, 1e+12
  %v507 = vmul.f32 %v479, %v506
  %v509 = vsel %vm71, %v507, 0
  %511 = vmatprep.subr.mxu0 0.0
  %512 = vmatpush1.msra.mxu0 %v497
  %513 = vmatprep.subr.mxu0 0.0
  %514 = vmatpush1.msra.mxu0 %v498
  %515 = vmatprep.subr.mxu0 0.0
  %516 = vmatpush1.msra.mxu0 %v499
  %517 = vmatprep.subr.mxu0 0.0
  %518 = vmatpush1.msra.mxu0 %v500
  %519 = vmatprep.subr.mxu0 0.0
  %520 = vmatpush1.msra.mxu0 0.0
  %521 = vmatprep.subr.mxu0 0.0
  %522 = vmatpush1.msra.mxu0 0.0
  %523 = vmatprep.subr.mxu0 0.0
  %524 = vmatpush1.msra.mxu0 0.0
  %525 = vmatprep.subr.mxu0 0.0
  %526 = vmatpush1.msra.mxu0 0.0
  %527 = vmatprep.subr.mxu0 0.0
  %528 = vmatpush1.msra.mxu0 0.0
  %529 = vmatprep.subr.mxu0 0.0
  %530 = vmatpush1.msra.mxu0 0.0
  %531 = vmatprep.subr.mxu0 0.0
  %532 = vmatpush1.msra.mxu0 0.0
  %533 = vmatprep.subr.mxu0 0.0
  %534 = vmatpush1.msra.mxu0 0.0
  %535 = vmatprep.subr.mxu0 0.0
  %536 = vmatpush1.msra.mxu0 0.0
  %537 = vmatprep.subr.mxu0 0.0
  %538 = vmatpush1.msra.mxu0 0.0
  %539 = vmatprep.subr.mxu0 0.0
  %540 = vmatpush1.msra.mxu0 0.0
  %541 = vmatprep.subr.mxu0 0.0
  %542 = vmatpush1.msra.mxu0 0.0
  %543 = vmatprep.subr.mxu0 0.0
  %544 = vmatpush1.msra.mxu0 0.0
  %545 = vmatprep.subr.mxu0 0.0
  %546 = vmatpush1.msra.mxu0 0.0
  %547 = vmatprep.subr.mxu0 0.0
  %548 = vmatpush1.msra.mxu0 0.0
  %549 = vmatprep.subr.mxu0 0.0
  %550 = vmatpush1.msra.mxu0 0.0
  %551 = vmatprep.subr.mxu0 0.0
  %552 = vmatpush1.msra.mxu0 0.0
  %553 = vmatprep.subr.mxu0 0.0
  %554 = vmatpush1.msra.mxu0 0.0
  %555 = vmatprep.subr.mxu0 0.0
  %556 = vmatpush1.msra.mxu0 0.0
  %557 = vmatprep.subr.mxu0 0.0
  %558 = vmatpush1.msra.mxu0 0.0
  %559 = vmatprep.subr.mxu0 0.0
  %560 = vmatpush1.msra.mxu0 0.0
  %561 = vmatprep.subr.mxu0 0.0
  %562 = vmatpush1.msra.mxu0 0.0
  %563 = vmatprep.subr.mxu0 0.0
  %564 = vmatpush1.msra.mxu0 0.0
  %565 = vmatprep.subr.mxu0 0.0
  %566 = vmatpush1.msra.mxu0 0.0
  %567 = vmatprep.subr.mxu0 0.0
  %568 = vmatpush1.msra.mxu0 0.0
  %569 = vmatprep.subr.mxu0 0.0
  %570 = vmatpush1.msra.mxu0 0.0
  %571 = vmatprep.subr.mxu0 0.0
  %572 = vmatpush1.msra.mxu0 0.0
  %573 = vmatprep.subr.mxu0 0.0
  %574 = vmatpush1.msra.mxu0 0.0
  %575 = vmatprep.mubr.f32.mxu0 0.0
  %576 = vmatmul.mubr.f32.gmra.mrb[0].mxu0 %v509
  %v577 = vpop.f32.mrb[0].mxu0
  %v578 = vadd.f32 0.0, %v577
  %v579 = vpop.f32.mrb[0].mxu0
  %580 = vdwg.mxu0
  %v581 = vlaneseq
  %v582 = vshrl.u32 %v581, 7
  %v583 = vsub.s32 0, %v582
  %v584 = vrot.slane %v481, %v583
  %586 = vbcast.lane.b32.xlu0 %v584, 256
  %v587 = vpop.permute.xlu0 %586
  %v588 = vlaneseq
  %v589 = vshrl.u32 %v588, 7
  %v590 = vsub.s32 1, %v589
  %v591 = vrot.slane %v455, %v590
  %v592 = vsub.f32 %v587, %v591
  %v593 = vlaneseq
  %v594 = vshrl.u32 %v593, 7
  %v595 = vsub.s32 1, %v594
  %v596 = vrot.slane %v481, %v595
  %598 = vbcast.lane.b32.xlu0 %v596, 256
  %v599 = vpop.permute.xlu0 %598
  %v600 = vlaneseq
  %v601 = vshrl.u32 %v600, 7
  %v602 = vsub.s32 2, %v601
  %v603 = vrot.slane %v455, %v602
  %v604 = vsub.f32 %v599, %v603
  %v605 = vmul.f32 %v592, %v592
  %v606 = vmul.f32 %v604, %v604
  %v607 = vadd.f32 %v605, %v606
  %v608 = vrsqrt.pop %v607
  %v609 = vmul.f32 %v607, %v608
  %vm610 = vcmp.eq.f32.partialorder %v607, inf
  %v611 = vsel %vm610, %v607, %v609
  %vm612 = vcmp.eq.f32.partialorder %v607, 0.0
  %v613 = vand.u32 %v607, 2147483648
  %v614 = vsel %vm612, %v613, %v611
  %v615 = vmul.f32 %v614, %v27
  %616 = vmax.xlane.f32.xlu0 %v615
  %v617 = vpop.xlane.xlu0 %616
  %v618 = vrot.slane %v617, 4
  %v619 = vmax.f32 %v617, %v618
  %v620 = vrot.slane %v619, 2
  %v621 = vmax.f32 %v619, %v620
  %v622 = vrot.slane %v621, 1
  %v623 = vmax.f32 %v621, %v622
  %s624 = vtos %v623
  %s625 = smax.f32 %s624, 1e-10
  %v626 = vstv %s625
  %v627 = vrcp.pop %v626
  %s628 = vtos %v627
  %v629 = vstv %s628
  %v630 = vmul.f32 %v615, %v629
  %v631 = vsub.f32 1.0, %v455
  %v632 = vsub.f32 1.0, %v578
  %v633 = vlaneseq
  %v634 = vshrl.u32 %v633, 7
  %v635 = vsub.s32 0, %v634
  %v636 = vrot.slane %v631, %v635
  %v637 = vadd.f32 %v636, %v632
  %v638 = vadd.f32 %v637, %v630
  %v639 = vmul.f32 %v638, -10.0
  %v640 = vmul.f32 %v639, 1.442695
  %v641 = vpow.pop %v640
  %v642 = vmul.f32 %v641, %v27
  %v643 = vrot.slane %v642, 4
  %v644 = vadd.f32 %v642, %v643
  %v645 = vrot.slane %v644, 2
  %v646 = vadd.f32 %v644, %v645
  %v647 = vrot.slane %v646, 1
  %v648 = vadd.f32 %v646, %v647
  %v649 = vadd.f32 %v648, 1e-10
  %v650 = vrcp.pop %v649
  %v651 = vmul.f32 %v642, %v650
  %652 = vadd.xlane.f32.xlu0 %v651
  %v653 = vpop.xlane.xlu0 %652
  %v654 = vadd.f32 %v653, 1e-10
  %v655 = vrcp.pop %v654
  %v656 = vmul.f32 %v642, %v655
  %v657 = vrot.slane %v656, 4
  %v658 = vadd.f32 %v656, %v657
  %v659 = vrot.slane %v658, 2
  %v660 = vadd.f32 %v658, %v659
  %v661 = vrot.slane %v660, 1
  %v662 = vadd.f32 %v660, %v661
  %v663 = vadd.f32 %v662, 1e-10
  %v664 = vrcp.pop %v663
  %v665 = vmul.f32 %v642, %v664
  %666 = vadd.xlane.f32.xlu0 %v665
  %v667 = vpop.xlane.xlu0 %666
  %v668 = vadd.f32 %v667, 1e-10
  %v669 = vrcp.pop %v668
  %v670 = vmul.f32 %v642, %v669
  %v671 = vrot.slane %v670, 4
  %v672 = vadd.f32 %v670, %v671
  %v673 = vrot.slane %v672, 2
  %v674 = vadd.f32 %v672, %v673
  %v675 = vrot.slane %v674, 1
  %v676 = vadd.f32 %v674, %v675
  %v677 = vadd.f32 %v676, 1e-10
  %v678 = vrcp.pop %v677
  %v679 = vmul.f32 %v642, %v678
  %680 = vadd.xlane.f32.xlu0 %v679
  %v681 = vpop.xlane.xlu0 %680
  %v682 = vadd.f32 %v681, 1e-10
  %v683 = vrcp.pop %v682
  %v684 = vmul.f32 %v642, %v683
  %v685 = vrot.slane %v684, 4
  %v686 = vadd.f32 %v684, %v685
  %v687 = vrot.slane %v686, 2
  %v688 = vadd.f32 %v686, %v687
  %v689 = vrot.slane %v688, 1
  %v690 = vadd.f32 %v688, %v689
  %v691 = vadd.f32 %v690, 1e-10
  %v692 = vrcp.pop %v691
  %v693 = vmul.f32 %v642, %v692
  %694 = vadd.xlane.f32.xlu0 %v693
  %v695 = vpop.xlane.xlu0 %694
  %v696 = vadd.f32 %v695, 1e-10
  %v697 = vrcp.pop %v696
  %v698 = vmul.f32 %v642, %v697
  %v699 = vrot.slane %v698, 4
  %v700 = vadd.f32 %v698, %v699
  %v701 = vrot.slane %v700, 2
  %v702 = vadd.f32 %v700, %v701
  %v703 = vrot.slane %v702, 1
  %v704 = vadd.f32 %v702, %v703
  %v705 = vadd.f32 %v704, 1e-10
  %v706 = vrcp.pop %v705
  %v707 = vmul.f32 %v642, %v706
  %708 = vadd.xlane.f32.xlu0 %v707
  %v709 = vpop.xlane.xlu0 %708
  %v710 = vadd.f32 %v709, 1e-10
  %v711 = vrcp.pop %v710
  %v712 = vmul.f32 %v642, %v711
  %v713 = vrot.slane %v712, 4
  %v714 = vadd.f32 %v712, %v713
  %v715 = vrot.slane %v714, 2
  %v716 = vadd.f32 %v714, %v715
  %v717 = vrot.slane %v716, 1
  %v718 = vadd.f32 %v716, %v717
  %v719 = vadd.f32 %v718, 1e-10
  %v720 = vrcp.pop %v719
  %v721 = vmul.f32 %v642, %v720
  %722 = vadd.xlane.f32.xlu0 %v721
  %v723 = vpop.xlane.xlu0 %722
  %v724 = vadd.f32 %v723, 1e-10
  %v725 = vrcp.pop %v724
  %v726 = vmul.f32 %v642, %v725
  %v727 = vrot.slane %v726, 4
  %v728 = vadd.f32 %v726, %v727
  %v729 = vrot.slane %v728, 2
  %v730 = vadd.f32 %v728, %v729
  %v731 = vrot.slane %v730, 1
  %v732 = vadd.f32 %v730, %v731
  %v733 = vadd.f32 %v732, 1e-10
  %v734 = vrcp.pop %v733
  %v735 = vmul.f32 %v642, %v734
  %736 = vadd.xlane.f32.xlu0 %v735
  %v737 = vpop.xlane.xlu0 %736
  %v738 = vadd.f32 %v737, 1e-10
  %v739 = vrcp.pop %v738
  %v740 = vmul.f32 %v642, %v739
  %v741 = vrot.slane %v740, 4
  %v742 = vadd.f32 %v740, %v741
  %v743 = vrot.slane %v742, 2
  %v744 = vadd.f32 %v742, %v743
  %v745 = vrot.slane %v744, 1
  %v746 = vadd.f32 %v744, %v745
  %v747 = vadd.f32 %v746, 1e-10
  %v748 = vrcp.pop %v747
  %v749 = vmul.f32 %v642, %v748
  %750 = vadd.xlane.f32.xlu0 %v749
  %v751 = vpop.xlane.xlu0 %750
  %v752 = vadd.f32 %v751, 1e-10
  %v753 = vrcp.pop %v752
  %v754 = vmul.f32 %v642, %v753
  %v755 = vrot.slane %v754, 4
  %v756 = vadd.f32 %v754, %v755
  %v757 = vrot.slane %v756, 2
  %v758 = vadd.f32 %v756, %v757
  %v759 = vrot.slane %v758, 1
  %v760 = vadd.f32 %v758, %v759
  %v761 = vadd.f32 %v760, 1e-10
  %v762 = vrcp.pop %v761
  %v763 = vmul.f32 %v642, %v762
  %764 = vadd.xlane.f32.xlu0 %v763
  %v765 = vpop.xlane.xlu0 %764
  %v766 = vadd.f32 %v765, 1e-10
  %v767 = vrcp.pop %v766
  %v768 = vmul.f32 %v642, %v767
  %v769 = vrot.slane %v768, 4
  %v770 = vadd.f32 %v768, %v769
  %v771 = vrot.slane %v770, 2
  %v772 = vadd.f32 %v770, %v771
  %v773 = vrot.slane %v772, 1
  %v774 = vadd.f32 %v772, %v773
  %v775 = vadd.f32 %v774, 1e-10
  %v776 = vrcp.pop %v775
  %v777 = vmul.f32 1.0, %v776
  %v778 = vmul.f32 %v642, %v777
  %779 = vadd.xlane.f32.xlu0 %v778
  %v780 = vpop.xlane.xlu0 %779
  %v781 = vadd.f32 %v780, 1e-10
  %v782 = vrcp.pop %v781
  %v783 = vmul.f32 1.0, %v782
  %v784 = vmul.f32 %v778, %v783
  %v785 = vpack.c.bf16 %v784, %v784
  %v802 = vunpack.c.l.b16 %v462
  %v803 = vunpack.c.l.b16 %v463
  %v804 = vunpack.c.l.b16 %v464
  %v805 = vunpack.c.l.b16 %v465
  %v806 = vunpack.c.l.b16 %v466
  %v807 = vunpack.c.l.b16 %v467
  %v808 = vunpack.c.l.b16 %v468
  %v809 = vunpack.c.l.b16 %v469
  %v810 = vunpack.c.l.b16 %v470
  %v811 = vunpack.c.l.b16 %v471
  %v812 = vunpack.c.l.b16 %v472
  %v813 = vunpack.c.l.b16 %v473
  %v814 = vunpack.c.l.b16 %v474
  %v815 = vunpack.c.l.b16 %v475
  %v816 = vunpack.c.l.b16 %v476
  %v817 = vunpack.c.l.b16 %v477
  %v818 = vpack.c.b16 %v803, %v802
  %v819 = vpack.c.b16 %v805, %v804
  %v820 = vpack.c.b16 %v807, %v806
  %v821 = vpack.c.b16 %v809, %v808
  %v822 = vpack.c.b16 %v811, %v810
  %v823 = vpack.c.b16 %v813, %v812
  %v824 = vpack.c.b16 %v815, %v814
  %v825 = vpack.c.b16 %v817, %v816
  %834 = vmatprep.subr.bf16.mxu0 0
  %835 = vmatpush1.bf16.msra.mxu0 %v818
  %836 = vmatprep.subr.bf16.mxu0 0
  %837 = vmatpush1.bf16.msra.mxu0 %v819
  %838 = vmatprep.subr.bf16.mxu0 0
  %839 = vmatpush1.bf16.msra.mxu0 %v820
  %840 = vmatprep.subr.bf16.mxu0 0
  %841 = vmatpush1.bf16.msra.mxu0 %v821
  %842 = vmatprep.subr.bf16.mxu0 0
  %843 = vmatpush1.bf16.msra.mxu0 %v822
  %844 = vmatprep.subr.bf16.mxu0 0
  %845 = vmatpush1.bf16.msra.mxu0 %v823
  %846 = vmatprep.subr.bf16.mxu0 0
  %847 = vmatpush1.bf16.msra.mxu0 %v824
  %848 = vmatprep.subr.bf16.mxu0 0
  %849 = vmatpush1.bf16.msra.mxu0 %v825
  %850 = vmatprep.subr.bf16.mxu0 0
  %851 = vmatpush1.bf16.msra.mxu0 0
  %852 = vmatprep.subr.bf16.mxu0 0
  %853 = vmatpush1.bf16.msra.mxu0 0
  %854 = vmatprep.subr.bf16.mxu0 0
  %855 = vmatpush1.bf16.msra.mxu0 0
  %856 = vmatprep.subr.bf16.mxu0 0
  %857 = vmatpush1.bf16.msra.mxu0 0
  %858 = vmatprep.subr.bf16.mxu0 0
  %859 = vmatpush1.bf16.msra.mxu0 0
  %860 = vmatprep.subr.bf16.mxu0 0
  %861 = vmatpush1.bf16.msra.mxu0 0
  %862 = vmatprep.subr.bf16.mxu0 0
  %863 = vmatpush1.bf16.msra.mxu0 0
  %864 = vmatprep.subr.bf16.mxu0 0
  %865 = vmatpush1.bf16.msra.mxu0 0
  %866 = vmatprep.mubr.bf16.mxu0 0
  %867 = vmatmul.mubr.bf16.gmra.mrb[0].mxu0 %v785
  %v868 = vpop.f32.mrb[0].mxu0
  %v869 = vadd.f32 0.0, %v868
  %v870 = vpop.f32.mrb[0].mxu0
  %v871 = vpop.f32.mrb[0].mxu0
  %v872 = vpop.f32.mrb[0].mxu0
  %873 = vdwg.mxu0
  %vm874 = vcmp.gt.f32.partialorder %v869, 0.05
  %v875 = vsel %vm874, 1, 0
  %876 = vset.pattern.permute.xlu0 36
  %877 = vperm.xlu0 %876, %v875
  %v878 = vpop.permute.xlu0 %877
  %vm879 = vcmp.eq.s32.totalorder %v878, 1
  %v880 = vsel %vm879, %v869, 0.0
  %s881 = scalar_lea.vmem %s5, 8
  %882 = vst.msk [vmem:[%s881] sm:$0xff] %vm451, %v880
  %s883 = scalar_lea.vmem %s6, 8
  %884 = vst [vmem:[%s883] sm:$0xff] %v784
  // Predicated region
  $region22: #{differentiable_nms.1} parent=0 // pred_check
    _
  $region23: #{differentiable_nms.1} parent=0 // pred_check_branch
    %886 = sbr.rel (0) target = $region25
  $region24: #{differentiable_nms.1} parent=0 // pred_region
    _
  $region25: #{differentiable_nms.1} parent=0 // pred_fallthru
    _
  // Predicated region
  $region26: #{differentiable_nms.1} parent=0 // pred_check
    _
  $region27: #{differentiable_nms.1} parent=0 // pred_check_branch
    %888 = sbr.rel (0) target = $region29
  $region28: #{differentiable_nms.1} parent=0 // pred_region
    _
  $region29: #{differentiable_nms.1} parent=0 // pred_fallthru
    _
  // Predicated region
  $region30: #{differentiable_nms.1} parent=0 // pred_check
    _
  $region31: #{differentiable_nms.1} parent=0 // pred_check_branch
    %890 = sbr.rel (0) target = $region33
  $region32: #{differentiable_nms.1} parent=0 // pred_region
    _
  $region33: #{differentiable_nms.1} parent=0 // pred_fallthru
    _
  // Predicated region
  $region34: #{differentiable_nms.1} parent=0 // pred_check
    _
  $region35: #{differentiable_nms.1} parent=0 // pred_check_branch
    %892 = sbr.rel (0) target = $region37
  $region36: #{differentiable_nms.1} parent=0 // pred_region
    _
  $region37: #{differentiable_nms.1} parent=0 // pred_fallthru
    _

</llo_original>
